<compile_context>
chip_gen: v7x
topology: tpu7x:2x2x1
jax: 0.10.0
libtpu: 0.0.40
codegen_flags: <defaults>
</compile_context>

<pallas_src>
import jax
import jax.numpy as jnp
from jax.experimental import pallas as pl
from jax.experimental.pallas import tpu as pltpu


def _attention_kernel(x_ref, w_ref, ctx_ref, attn_ref):
    # x_ref   : (Bb, S, H)  block of LSTM output (native dtype)
    # w_ref   : (1, H)      nn.Linear(H, 1).weight layout
    # ctx_ref : (Bb, 1, H)  context vector block
    # attn_ref: (Bb, 1, S)  attention weights block (S on the lane axis)
    Bb, S, H = x_ref.shape
    x = x_ref[...]                                   # keep native dtype (f32/bf16)
    w = w_ref[...].astype(x.dtype).reshape(1, 1, H)  # (1, 1, H)
    wb = jnp.broadcast_to(w, (Bb, 1, H))             # small: batch dim for the MXU

    # scores[b, 0, s] = sum_h w[h] * x[b, s, h]   (fused contraction on the MXU,
    # f32 accumulate; bias omitted — softmax is shift-invariant).
    scores = jnp.einsum(
        "bqh,bsh->bqs", wb, x,
        preferred_element_type=jnp.float32,
        precision=jax.lax.Precision.HIGHEST)         # (Bb, 1, S) f32

    # Exact softmax over the sequence (lane) axis.
    m = jnp.max(scores, axis=-1, keepdims=True)      # (Bb, 1, 1)
    e = jnp.exp(scores - m)                          # (Bb, 1, S)
    denom = jnp.sum(e, axis=-1, keepdims=True)       # (Bb, 1, 1)
    weights = e / denom                              # exact normalization

    # context[b, 0, h] = sum_s weights[b, 0, s] * x[b, s, h]
    ctx = jnp.einsum(
        "bqs,bsh->bqh", weights.astype(x.dtype), x,
        preferred_element_type=jnp.float32,
        precision=jax.lax.Precision.HIGHEST)         # (Bb, 1, H) f32

    ctx_ref[...] = ctx.astype(ctx_ref.dtype)
    attn_ref[...] = weights.astype(attn_ref.dtype)


def _choose_block_b(B, S, H, itemsize, target_bytes=8 << 20):
    """Batch rows per grid step: ~8 MiB input tiles, but keep >= ~8 grid steps
    when the batch is large enough (pipeline overlap + both v7x TensorCores)."""
    row_bytes = S * H * itemsize
    rows = max(1, target_bytes // row_bytes)
    steps_cap = pl.cdiv(B, 8)                         # aim for ~8 grid steps
    steps_cap = max(8, ((steps_cap + 7) // 8) * 8)    # round up to multiple of 8
    rows = min(int(rows), int(steps_cap))
    if rows >= B:
        return B
    if rows >= 8:
        rows -= rows % 8                              # sublane-friendly leading dim
    return max(1, rows)


def attention_layer(lstm_output, weight, bias=None):
    """Pallas implementation of AttentionLayer.forward.

    Args:
      lstm_output: (B, S, H) float32 or bfloat16
      weight     : (1, H)    (PyTorch nn.Linear(H, 1).weight layout)
      bias       : (1,)      unused — softmax is shift-invariant, outputs identical
    Returns:
      (context_vector (B, H), attention_weights (B, S, 1))
    """
    del bias  # exact no-op for the softmax'd scores
    B, S, H = lstm_output.shape
    itemsize = jnp.dtype(lstm_output.dtype).itemsize
    Bb = _choose_block_b(B, S, H, itemsize)
    grid = (pl.cdiv(B, Bb),)
    w = weight.astype(lstm_output.dtype)

    # VMEM budget: double-buffered input block + live copy + padded (Bb,1,*)
    # blocks/temporaries, capped so it also fits v7x's 64 MiB physical VMEM.
    in_block_bytes = Bb * S * H * itemsize
    padded_small = 8 * Bb * (H + S) * 4               # (Bb,1,*) tiles pad sublanes to 8
    vmem_limit = int(min(48 << 20,
                         max(32 << 20, 4 * in_block_bytes + 4 * padded_small + (2 << 20))))

    cost = pl.CostEstimate(
        flops=4 * B * S * H + 6 * B * S,
        transcendentals=B * S,
        bytes_accessed=itemsize * (B * S * H + B * H + B * S + H))

    grid_spec = pltpu.PrefetchScalarGridSpec(
        num_scalar_prefetch=0,
        grid=grid,
        in_specs=[
            pl.BlockSpec((Bb, S, H), lambda i: (i, 0, 0)),
            pl.BlockSpec((1, H), lambda i: (0, 0)),
        ],
        out_specs=[
            pl.BlockSpec((Bb, 1, H), lambda i: (i, 0, 0)),
            pl.BlockSpec((Bb, 1, S), lambda i: (i, 0, 0)),
        ],
    )

    ctx3, attn3 = pl.pallas_call(
        _attention_kernel,
        out_shape=(
            jax.ShapeDtypeStruct((B, 1, H), lstm_output.dtype),
            jax.ShapeDtypeStruct((B, 1, S), lstm_output.dtype),
        ),
        grid_spec=grid_spec,
        compiler_params=pltpu.CompilerParams(
            dimension_semantics=("parallel",),
            vmem_limit_bytes=vmem_limit),
        cost_estimate=cost,
    )(lstm_output, w)

    # (B,1,H)->(B,H) and (B,1,S)->(B,S,1): same linear element order, so these
    # reshapes are metadata-only outside the kernel.
    return ctx3.reshape(B, H), attn3.reshape(B, S, 1)


def _reference(lstm_output, weight, bias):
    scores = jnp.einsum("bsh,oh->bso", lstm_output, weight,
                        precision=jax.lax.Precision.HIGHEST) + bias   # (B,S,1)
    attn = jax.nn.softmax(scores, axis=1)
    ctx = jnp.sum(attn * lstm_output, axis=1)
    return ctx, attn


if __name__ == "__main__":
    B, S, H = 2, 8, 32
    key = jax.random.PRNGKey(0)
    kx, kw, kb = jax.random.split(key, 3)

    lstm_output = jax.random.normal(kx, (B, S, H), dtype=jnp.float32)
    # Deterministic nn.Linear(hidden_size, 1) parameters.
    bound = 1.0 / (H ** 0.5)
    weight = jax.random.uniform(kw, (1, H), jnp.float32, -bound, bound)
    bias = jax.random.uniform(kb, (1,), jnp.float32, -bound, bound)

    ctx, attn = attention_layer(lstm_output, weight, bias)
    jax.block_until_ready((ctx, attn))

    ctx_ref, attn_ref = _reference(lstm_output, weight, bias)
    assert ctx.shape == (B, H) and attn.shape == (B, S, 1)
    # Softmax is exact and contractions run at HIGHEST precision, so the only
    # differences are op-ordering rounding (~1e-6).
    assert jnp.allclose(ctx, ctx_ref, atol=1e-4, rtol=1e-4), float(
        jnp.max(jnp.abs(ctx - ctx_ref)))
    assert jnp.allclose(attn, attn_ref, atol=1e-4, rtol=1e-4), float(
        jnp.max(jnp.abs(attn - attn_ref)))

    print("KERNEL_OK")
</pallas_src>

<mosaic_0001>
module attributes {stable_mosaic.version = 11 : i64} {
  func.func @_attention_kernel(%arg0: i32, %arg1: memref<2x8x32xf32, #tpu.memory_space<vmem>>, %arg2: memref<1x32xf32, #tpu.memory_space<vmem>>, %arg3: memref<2x1x32xf32, #tpu.memory_space<vmem>>, %arg4: memref<2x1x8xf32, #tpu.memory_space<vmem>>) attributes {dimension_semantics = [#tpu.dimension_semantics<parallel>], iteration_bounds = array<i64: 1>, scalar_prefetch = 0 : i64, scratch_operands = 0 : i64, tpu.core_type = #tpu.core_type<tc>, window_params = [{transform_indices = @transform_0, window_bounds = array<i64: 2, 8, 32>}, {pipeline_mode = #tpu.pipeline_mode<synchronous>, transform_indices = @transform_1, window_bounds = array<i64: 1, 32>}, {transform_indices = @transform_2, window_bounds = array<i64: 2, 1, 32>}, {transform_indices = @transform_3, window_bounds = array<i64: 2, 1, 8>}]} {
    %c0 = arith.constant 0 : index
    %c0_0 = arith.constant 0 : index
    %c0_1 = arith.constant 0 : index
    %0 = vector.load %arg1[%c0, %c0_0, %c0_1] : memref<2x8x32xf32, #tpu.memory_space<vmem>>, vector<2x8x32xf32>
    %c0_2 = arith.constant 0 : index
    %c0_3 = arith.constant 0 : index
    %1 = vector.load %arg2[%c0_2, %c0_3] : memref<1x32xf32, #tpu.memory_space<vmem>>, vector<1x32xf32>
    %2 = vector.shape_cast %1 : vector<1x32xf32> to vector<1x1x32xf32>
    %3 = vector.shape_cast %2 : vector<1x1x32xf32> to vector<1x1x32xf32>
    %4 = vector.broadcast %3 : vector<1x1x32xf32> to vector<2x1x32xf32>
    "tpu.trace_start"() <{level = 10 : i32, message = "bqh,bsh->bqs"}> : () -> ()
    %cst = arith.constant dense<0.000000e+00> : vector<2x1x8xf32>
    %5 = tpu.matmul %4, %0, %cst {dimension_numbers = #tpu.dot_dimension_numbers<[2], [2], [1], [1], [0, 0, 0, 1, 1, 1], [0], [0]>, precision = #tpu.contract_precision<fp32>} : vector<2x1x32xf32>, vector<2x8x32xf32>, vector<2x1x8xf32> -> vector<2x1x8xf32>
    "tpu.trace_stop"() : () -> ()
    %cst_4 = arith.constant dense<0xFF800000> : vector<2x1xf32>
    %6 = vector.multi_reduction <maximumf>, %5, %cst_4 [2] : vector<2x1x8xf32> to vector<2x1xf32>
    %7 = vector.shape_cast %6 : vector<2x1xf32> to vector<2x1x1xf32>
    %8 = vector.broadcast %7 : vector<2x1x1xf32> to vector<2x1x8xf32>
    %9 = arith.subf %5, %8 : vector<2x1x8xf32>
    %10 = math.exp %9 : vector<2x1x8xf32>
    %cst_5 = arith.constant dense<0.000000e+00> : vector<2x1xf32>
    %11 = vector.multi_reduction <add>, %10, %cst_5 [2] : vector<2x1x8xf32> to vector<2x1xf32>
    %12 = vector.shape_cast %11 : vector<2x1xf32> to vector<2x1x1xf32>
    %13 = vector.broadcast %12 : vector<2x1x1xf32> to vector<2x1x8xf32>
    %14 = arith.divf %10, %13 : vector<2x1x8xf32>
    "tpu.trace_start"() <{level = 10 : i32, message = "bqs,bsh->bqh"}> : () -> ()
    %cst_6 = arith.constant dense<0.000000e+00> : vector<2x1x32xf32>
    %15 = tpu.matmul %14, %0, %cst_6 {dimension_numbers = #tpu.dot_dimension_numbers<[2], [1], [1], [2], [0, 0, 0, 1, 1, 2], [0], [0]>, precision = #tpu.contract_precision<fp32>} : vector<2x1x8xf32>, vector<2x8x32xf32>, vector<2x1x32xf32> -> vector<2x1x32xf32>
    "tpu.trace_stop"() : () -> ()
    %c0_7 = arith.constant 0 : index
    %c0_8 = arith.constant 0 : index
    %c0_9 = arith.constant 0 : index
    %16 = vector.load %arg3[%c0_7, %c0_8, %c0_9] : memref<2x1x32xf32, #tpu.memory_space<vmem>>, vector<2x1x32xf32>
    tpu.vector_store %arg3[%c0_7, %c0_8, %c0_9], %15 {strides = array<i32>} : memref<2x1x32xf32, #tpu.memory_space<vmem>>, vector<2x1x32xf32>,
    %c0_10 = arith.constant 0 : index
    %c0_11 = arith.constant 0 : index
    %c0_12 = arith.constant 0 : index
    %17 = vector.load %arg4[%c0_10, %c0_11, %c0_12] : memref<2x1x8xf32, #tpu.memory_space<vmem>>, vector<2x1x8xf32>
    tpu.vector_store %arg4[%c0_10, %c0_11, %c0_12], %14 {strides = array<i32>} : memref<2x1x8xf32, #tpu.memory_space<vmem>>, vector<2x1x8xf32>,
    return
  }
  func.func @transform_0(%arg0: i32) -> (i32, i32, i32) {
    %c0_i32 = arith.constant 0 : i32
    %c0_i32_0 = arith.constant 0 : i32
    %c0_i32_1 = arith.constant 0 : i32
    return %arg0, %c0_i32, %c0_i32_0 : i32, i32, i32
  }
  func.func @transform_1(%arg0: i32) -> (i32, i32) {
    %c0_i32 = arith.constant 0 : i32
    %c0_i32_0 = arith.constant 0 : i32
    %c0_i32_1 = arith.constant 0 : i32
    return %c0_i32, %c0_i32_0 : i32, i32
  }
  func.func @transform_2(%arg0: i32) -> (i32, i32, i32) {
    %c0_i32 = arith.constant 0 : i32
    %c0_i32_0 = arith.constant 0 : i32
    %c0_i32_1 = arith.constant 0 : i32
    return %arg0, %c0_i32, %c0_i32_0 : i32, i32, i32
  }
  func.func @transform_3(%arg0: i32) -> (i32, i32, i32) {
    %c0_i32 = arith.constant 0 : i32
    %c0_i32_0 = arith.constant 0 : i32
    %c0_i32_1 = arith.constant 0 : i32
    return %arg0, %c0_i32, %c0_i32_0 : i32, i32, i32
  }
}

</mosaic_0001>

<llo_original>
// kernel: tpu_custom_call.1
$region0: #{tpu_custom_call.1}
  #allocation0 [shape = 'u32[]', space=smem, size = 0x4, offset = 0x4, fixed_abs, tag = 'smem constant byte address 0x4 - core index']
  #allocation1 [shape = 'u32[144,128]{1,0:T(1,128)}', space=vmem, size = 0x12000, scoped, tag = 'internal scratch']
  %s0 = inlined_call_operand.hbm [shape: f32[2,8,32], index: 0, kind: input, shape index: {}]
  %s1 = inlined_call_operand.vmem [shape: f32[1,32], index: 1, kind: input, shape index: {}]
  %s2 = inlined_call_operand.hbm [shape: f32[2,1,32], index: 2, kind: output, shape index: {0}]
  %s3 = inlined_call_operand.hbm [shape: f32[2,1,8], index: 3, kind: output, shape index: {1}]
  %4 = xla_tuple %s2, %s3
  %s5 = sld [smem:[#allocation0]]
  $region30: #{tpu_custom_call.1} parent=0
    _
  %s7 = ssub.s32 1, %s5
  %s8 = scalar_select 0, %s7, %s5
  $region1: #{tpu_custom_call.1} parent=0
    #allocation2 [shape = 'u8[8192]{0}', space=vmem, size = 0x2000, scoped, tag = 'input window, operand 0, single buffered']
    #allocation3 [shape = 's32[1]{0}', space=sflag, size = 0x4, scoped, tag = 'scoped memory for tpu_custom_call.1']
    #allocation4 [shape = 's32[1]{0}', space=sflag, size = 0x4, scoped, tag = 'scoped memory for tpu_custom_call.1']
    #allocation5 [shape = 'u8[1024]{0}', space=vmem, size = 0x400, scoped, tag = 'output window, operand 0, single buffered']
    #allocation6 [shape = 'u8[1024]{0}', space=vmem, size = 0x400, scoped, tag = 'output window, operand 1, single buffered']
    #allocation7 [shape = 's32[1]{0}', space=sflag, size = 0x4, scoped, tag = 'scoped memory for tpu_custom_call.1']
    %9 = vsyncpa [#allocation3], 0
    %10 = vsyncpa [#allocation4], 0
    %11 = vsyncpa [#allocation7], 0
    // Predicated region
    $region2: #{tpu_custom_call.1} parent=1 // pred_check
      _
    $region3: #{tpu_custom_call.1} parent=1 // pred_check_branch
      %13 = sbr.rel (0) target = $region5
    $region4: #{tpu_custom_call.1} parent=1 // pred_region
      %s15 = ssub.s32 256, 256
      %16 = vsyncadd [#allocation3], %s15
      %s17 = sshll.u32 [#allocation2], 4
      %s18 = int_to_ptr.vmem [resolvable:$true] %s17
      %23 = dma.hbm_to_vmem [thread:$0]  %s0, 256, %s18, [#allocation3], 128, 128, 8
    $region5: #{tpu_custom_call.1} parent=1 // pred_fallthru
      _
    // Predicated region
    $region6: #{tpu_custom_call.1} parent=1 // pred_check
      _
    $region7: #{tpu_custom_call.1} parent=1 // pred_check_branch
      %25 = sbr.rel (0) target = $region9
    $region8: #{tpu_custom_call.1} parent=1 // pred_region
      _
    $region9: #{tpu_custom_call.1} parent=1 // pred_fallthru
      _
    // Predicated region
    $region10: #{tpu_custom_call.1} parent=1 // pred_check
      _
    $region11: #{tpu_custom_call.1} parent=1 // pred_check_branch
      %27 = sbr.rel (0) target = $region13
    $region12: #{tpu_custom_call.1} parent=1 // pred_region
      %28 = dma.done [#allocation3], 256
    $region13: #{tpu_custom_call.1} parent=1 // pred_fallthru
      _
    %v29 = vld [vmem:[#allocation2] sm:$0xff]
    %v30 = vld [vmem:[#allocation2 + $0x8] sm:$0xff]
    %v31 = vld [vmem:[%s1] sm:$0x1]
    %vm32 = vcmask 261120
    %v34 = vsel %vm32, %v31, 0
    %v37 = vsel %vm32, %v29, 0
    %39 = vmatprep.subr.mxu0 0.0
    %v40 = vand.u32 %v37, 4294901760
    %41 = vmatpush1.xpose.msra.mxu0 %v40
    %42 = vmatprep.subr.mxu0 0.0
    %43 = vmatpush1.xpose.msra.mxu0 0.0
    %44 = vmatprep.subr.mxu0 0.0
    %45 = vmatpush1.xpose.msra.mxu0 0.0
    %46 = vmatprep.subr.mxu0 0.0
    %47 = vmatpush1.xpose.msra.mxu0 0.0
    %48 = vmatprep.subr.mxu0 0.0
    %49 = vmatpush1.xpose.msra.mxu0 0.0
    %50 = vmatprep.subr.mxu0 0.0
    %51 = vmatpush1.xpose.msra.mxu0 0.0
    %52 = vmatprep.subr.mxu0 0.0
    %53 = vmatpush1.xpose.msra.mxu0 0.0
    %54 = vmatprep.subr.mxu0 0.0
    %55 = vmatpush1.xpose.msra.mxu0 0.0
    %56 = vmatprep.subr.mxu0 0.0
    %57 = vmatpush1.xpose.msra.mxu0 0.0
    %58 = vmatprep.subr.mxu0 0.0
    %59 = vmatpush1.xpose.msra.mxu0 0.0
    %60 = vmatprep.subr.mxu0 0.0
    %61 = vmatpush1.xpose.msra.mxu0 0.0
    %62 = vmatprep.subr.mxu0 0.0
    %63 = vmatpush1.xpose.msra.mxu0 0.0
    %64 = vmatprep.subr.mxu0 0.0
    %65 = vmatpush1.xpose.msra.mxu0 0.0
    %66 = vmatprep.subr.mxu0 0.0
    %67 = vmatpush1.xpose.msra.mxu0 0.0
    %68 = vmatprep.subr.mxu0 0.0
    %69 = vmatpush1.xpose.msra.mxu0 0.0
    %70 = vmatprep.subr.mxu0 0.0
    %71 = vmatpush1.xpose.msra.mxu0 0.0
    %72 = vmatprep.subr.mxu0 0.0
    %73 = vmatpush1.xpose.msra.mxu0 0.0
    %74 = vmatprep.subr.mxu0 0.0
    %75 = vmatpush1.xpose.msra.mxu0 0.0
    %76 = vmatprep.subr.mxu0 0.0
    %77 = vmatpush1.xpose.msra.mxu0 0.0
    %78 = vmatprep.subr.mxu0 0.0
    %79 = vmatpush1.xpose.msra.mxu0 0.0
    %80 = vmatprep.subr.mxu0 0.0
    %81 = vmatpush1.xpose.msra.mxu0 0.0
    %82 = vmatprep.subr.mxu0 0.0
    %83 = vmatpush1.xpose.msra.mxu0 0.0
    %84 = vmatprep.subr.mxu0 0.0
    %85 = vmatpush1.xpose.msra.mxu0 0.0
    %86 = vmatprep.subr.mxu0 0.0
    %87 = vmatpush1.xpose.msra.mxu0 0.0
    %88 = vmatprep.subr.mxu0 0.0
    %89 = vmatpush1.xpose.msra.mxu0 0.0
    %90 = vmatprep.subr.mxu0 0.0
    %91 = vmatpush1.xpose.msra.mxu0 0.0
    %92 = vmatprep.subr.mxu0 0.0
    %93 = vmatpush1.xpose.msra.mxu0 0.0
    %94 = vmatprep.subr.mxu0 0.0
    %95 = vmatpush1.xpose.msra.mxu0 0.0
    %96 = vmatprep.subr.mxu0 0.0
    %97 = vmatpush1.xpose.msra.mxu0 0.0
    %98 = vmatprep.subr.mxu0 0.0
    %99 = vmatpush1.xpose.msra.mxu0 0.0
    %100 = vmatprep.subr.mxu0 0.0
    %101 = vmatpush1.xpose.msra.mxu0 0.0
    %102 = vmatprep.subr.mxu0 0.0
    %103 = vmatpush1.xpose.msra.mxu0 0.0
    %104 = vmatprep.mubr.f32.mxu0 0.0
    %v105 = vand.u32 %v34, 4294901760
    %v106 = vsub.f32 %v34, %v105
    %v107 = vand.u32 %v106, 4294901760
    %v108 = vsub.f32 %v106, %v107
    %v109 = vand.u32 %v108, 4294901760
    %110 = vmatmul.mubr.f32.gmra.mrb[0].mxu0 %v109
    %v111 = vpop.f32.mrb[0].mxu0
    %v112 = vadd.f32 0.0, %v111
    %v113 = vpop.f32.mrb[0].mxu0
    %114 = vdwg.mxu0
    %115 = vmatprep.subr.mxu0 0.0
    %v116 = vand.u32 %v37, 4294901760
    %v117 = vsub.f32 %v37, %v116
    %v118 = vand.u32 %v117, 4294901760
    %v119 = vsub.f32 %v117, %v118
    %v120 = vand.u32 %v119, 4294901760
    %121 = vmatpush1.xpose.msra.mxu0 %v120
    %122 = vmatprep.subr.mxu0 0.0
    %123 = vmatpush1.xpose.msra.mxu0 0.0
    %124 = vmatprep.subr.mxu0 0.0
    %125 = vmatpush1.xpose.msra.mxu0 0.0
    %126 = vmatprep.subr.mxu0 0.0
    %127 = vmatpush1.xpose.msra.mxu0 0.0
    %128 = vmatprep.subr.mxu0 0.0
    %129 = vmatpush1.xpose.msra.mxu0 0.0
    %130 = vmatprep.subr.mxu0 0.0
    %131 = vmatpush1.xpose.msra.mxu0 0.0
    %132 = vmatprep.subr.mxu0 0.0
    %133 = vmatpush1.xpose.msra.mxu0 0.0
    %134 = vmatprep.subr.mxu0 0.0
    %135 = vmatpush1.xpose.msra.mxu0 0.0
    %136 = vmatprep.subr.mxu0 0.0
    %137 = vmatpush1.xpose.msra.mxu0 0.0
    %138 = vmatprep.subr.mxu0 0.0
    %139 = vmatpush1.xpose.msra.mxu0 0.0
    %140 = vmatprep.subr.mxu0 0.0
    %141 = vmatpush1.xpose.msra.mxu0 0.0
    %142 = vmatprep.subr.mxu0 0.0
    %143 = vmatpush1.xpose.msra.mxu0 0.0
    %144 = vmatprep.subr.mxu0 0.0
    %145 = vmatpush1.xpose.msra.mxu0 0.0
    %146 = vmatprep.subr.mxu0 0.0
    %147 = vmatpush1.xpose.msra.mxu0 0.0
    %148 = vmatprep.subr.mxu0 0.0
    %149 = vmatpush1.xpose.msra.mxu0 0.0
    %150 = vmatprep.subr.mxu0 0.0
    %151 = vmatpush1.xpose.msra.mxu0 0.0
    %152 = vmatprep.subr.mxu0 0.0
    %153 = vmatpush1.xpose.msra.mxu0 0.0
    %154 = vmatprep.subr.mxu0 0.0
    %155 = vmatpush1.xpose.msra.mxu0 0.0
    %156 = vmatprep.subr.mxu0 0.0
    %157 = vmatpush1.xpose.msra.mxu0 0.0
    %158 = vmatprep.subr.mxu0 0.0
    %159 = vmatpush1.xpose.msra.mxu0 0.0
    %160 = vmatprep.subr.mxu0 0.0
    %161 = vmatpush1.xpose.msra.mxu0 0.0
    %162 = vmatprep.subr.mxu0 0.0
    %163 = vmatpush1.xpose.msra.mxu0 0.0
    %164 = vmatprep.subr.mxu0 0.0
    %165 = vmatpush1.xpose.msra.mxu0 0.0
    %166 = vmatprep.subr.mxu0 0.0
    %167 = vmatpush1.xpose.msra.mxu0 0.0
    %168 = vmatprep.subr.mxu0 0.0
    %169 = vmatpush1.xpose.msra.mxu0 0.0
    %170 = vmatprep.subr.mxu0 0.0
    %171 = vmatpush1.xpose.msra.mxu0 0.0
    %172 = vmatprep.subr.mxu0 0.0
    %173 = vmatpush1.xpose.msra.mxu0 0.0
    %174 = vmatprep.subr.mxu0 0.0
    %175 = vmatpush1.xpose.msra.mxu0 0.0
    %176 = vmatprep.subr.mxu0 0.0
    %177 = vmatpush1.xpose.msra.mxu0 0.0
    %178 = vmatprep.subr.mxu0 0.0
    %179 = vmatpush1.xpose.msra.mxu0 0.0
    %180 = vmatprep.subr.mxu0 0.0
    %181 = vmatpush1.xpose.msra.mxu0 0.0
    %182 = vmatprep.subr.mxu0 0.0
    %183 = vmatpush1.xpose.msra.mxu0 0.0
    %184 = vmatprep.mubr.f32.mxu0 0.0
    %v185 = vand.u32 %v34, 4294901760
    %186 = vmatmul.mubr.f32.gmra.mrb[0].mxu0 %v185
    %v187 = vpop.f32.mrb[0].mxu0
    %v188 = vadd.f32 %v112, %v187
    %v189 = vpop.f32.mrb[0].mxu0
    %190 = vdwg.mxu0
    %191 = vmatprep.subr.mxu0 0.0
    %v192 = vand.u32 %v37, 4294901760
    %v193 = vsub.f32 %v37, %v192
    %194 = vmatpush1.xpose.msra.mxu0 %v193
    %195 = vmatprep.subr.mxu0 0.0
    %196 = vmatpush1.xpose.msra.mxu0 0.0
    %197 = vmatprep.subr.mxu0 0.0
    %198 = vmatpush1.xpose.msra.mxu0 0.0
    %199 = vmatprep.subr.mxu0 0.0
    %200 = vmatpush1.xpose.msra.mxu0 0.0
    %201 = vmatprep.subr.mxu0 0.0
    %202 = vmatpush1.xpose.msra.mxu0 0.0
    %203 = vmatprep.subr.mxu0 0.0
    %204 = vmatpush1.xpose.msra.mxu0 0.0
    %205 = vmatprep.subr.mxu0 0.0
    %206 = vmatpush1.xpose.msra.mxu0 0.0
    %207 = vmatprep.subr.mxu0 0.0
    %208 = vmatpush1.xpose.msra.mxu0 0.0
    %209 = vmatprep.subr.mxu0 0.0
    %210 = vmatpush1.xpose.msra.mxu0 0.0
    %211 = vmatprep.subr.mxu0 0.0
    %212 = vmatpush1.xpose.msra.mxu0 0.0
    %213 = vmatprep.subr.mxu0 0.0
    %214 = vmatpush1.xpose.msra.mxu0 0.0
    %215 = vmatprep.subr.mxu0 0.0
    %216 = vmatpush1.xpose.msra.mxu0 0.0
    %217 = vmatprep.subr.mxu0 0.0
    %218 = vmatpush1.xpose.msra.mxu0 0.0
    %219 = vmatprep.subr.mxu0 0.0
    %220 = vmatpush1.xpose.msra.mxu0 0.0
    %221 = vmatprep.subr.mxu0 0.0
    %222 = vmatpush1.xpose.msra.mxu0 0.0
    %223 = vmatprep.subr.mxu0 0.0
    %224 = vmatpush1.xpose.msra.mxu0 0.0
    %225 = vmatprep.subr.mxu0 0.0
    %226 = vmatpush1.xpose.msra.mxu0 0.0
    %227 = vmatprep.subr.mxu0 0.0
    %228 = vmatpush1.xpose.msra.mxu0 0.0
    %229 = vmatprep.subr.mxu0 0.0
    %230 = vmatpush1.xpose.msra.mxu0 0.0
    %231 = vmatprep.subr.mxu0 0.0
    %232 = vmatpush1.xpose.msra.mxu0 0.0
    %233 = vmatprep.subr.mxu0 0.0
    %234 = vmatpush1.xpose.msra.mxu0 0.0
    %235 = vmatprep.subr.mxu0 0.0
    %236 = vmatpush1.xpose.msra.mxu0 0.0
    %237 = vmatprep.subr.mxu0 0.0
    %238 = vmatpush1.xpose.msra.mxu0 0.0
    %239 = vmatprep.subr.mxu0 0.0
    %240 = vmatpush1.xpose.msra.mxu0 0.0
    %241 = vmatprep.subr.mxu0 0.0
    %242 = vmatpush1.xpose.msra.mxu0 0.0
    %243 = vmatprep.subr.mxu0 0.0
    %244 = vmatpush1.xpose.msra.mxu0 0.0
    %245 = vmatprep.subr.mxu0 0.0
    %246 = vmatpush1.xpose.msra.mxu0 0.0
    %247 = vmatprep.subr.mxu0 0.0
    %248 = vmatpush1.xpose.msra.mxu0 0.0
    %249 = vmatprep.subr.mxu0 0.0
    %250 = vmatpush1.xpose.msra.mxu0 0.0
    %251 = vmatprep.subr.mxu0 0.0
    %252 = vmatpush1.xpose.msra.mxu0 0.0
    %253 = vmatprep.subr.mxu0 0.0
    %254 = vmatpush1.xpose.msra.mxu0 0.0
    %255 = vmatprep.subr.mxu0 0.0
    %256 = vmatpush1.xpose.msra.mxu0 0.0
    %257 = vmatprep.mubr.f32.mxu0 0.0
    %v258 = vand.u32 %v34, 4294901760
    %v259 = vsub.f32 %v34, %v258
    %260 = vmatmul.mubr.f32.gmra.mrb[0].mxu0 %v259
    %v261 = vpop.f32.mrb[0].mxu0
    %v262 = vadd.f32 %v188, %v261
    %v263 = vpop.f32.mrb[0].mxu0
    %264 = vdwg.mxu0
    %265 = vmatprep.subr.mxu0 0.0
    %v266 = vand.u32 %v37, 4294901760
    %267 = vmatpush1.xpose.msra.mxu0 %v266
    %268 = vmatprep.subr.mxu0 0.0
    %269 = vmatpush1.xpose.msra.mxu0 0.0
    %270 = vmatprep.subr.mxu0 0.0
    %271 = vmatpush1.xpose.msra.mxu0 0.0
    %272 = vmatprep.subr.mxu0 0.0
    %273 = vmatpush1.xpose.msra.mxu0 0.0
    %274 = vmatprep.subr.mxu0 0.0
    %275 = vmatpush1.xpose.msra.mxu0 0.0
    %276 = vmatprep.subr.mxu0 0.0
    %277 = vmatpush1.xpose.msra.mxu0 0.0
    %278 = vmatprep.subr.mxu0 0.0
    %279 = vmatpush1.xpose.msra.mxu0 0.0
    %280 = vmatprep.subr.mxu0 0.0
    %281 = vmatpush1.xpose.msra.mxu0 0.0
    %282 = vmatprep.subr.mxu0 0.0
    %283 = vmatpush1.xpose.msra.mxu0 0.0
    %284 = vmatprep.subr.mxu0 0.0
    %285 = vmatpush1.xpose.msra.mxu0 0.0
    %286 = vmatprep.subr.mxu0 0.0
    %287 = vmatpush1.xpose.msra.mxu0 0.0
    %288 = vmatprep.subr.mxu0 0.0
    %289 = vmatpush1.xpose.msra.mxu0 0.0
    %290 = vmatprep.subr.mxu0 0.0
    %291 = vmatpush1.xpose.msra.mxu0 0.0
    %292 = vmatprep.subr.mxu0 0.0
    %293 = vmatpush1.xpose.msra.mxu0 0.0
    %294 = vmatprep.subr.mxu0 0.0
    %295 = vmatpush1.xpose.msra.mxu0 0.0
    %296 = vmatprep.subr.mxu0 0.0
    %297 = vmatpush1.xpose.msra.mxu0 0.0
    %298 = vmatprep.subr.mxu0 0.0
    %299 = vmatpush1.xpose.msra.mxu0 0.0
    %300 = vmatprep.subr.mxu0 0.0
    %301 = vmatpush1.xpose.msra.mxu0 0.0
    %302 = vmatprep.subr.mxu0 0.0
    %303 = vmatpush1.xpose.msra.mxu0 0.0
    %304 = vmatprep.subr.mxu0 0.0
    %305 = vmatpush1.xpose.msra.mxu0 0.0
    %306 = vmatprep.subr.mxu0 0.0
    %307 = vmatpush1.xpose.msra.mxu0 0.0
    %308 = vmatprep.subr.mxu0 0.0
    %309 = vmatpush1.xpose.msra.mxu0 0.0
    %310 = vmatprep.subr.mxu0 0.0
    %311 = vmatpush1.xpose.msra.mxu0 0.0
    %312 = vmatprep.subr.mxu0 0.0
    %313 = vmatpush1.xpose.msra.mxu0 0.0
    %314 = vmatprep.subr.mxu0 0.0
    %315 = vmatpush1.xpose.msra.mxu0 0.0
    %316 = vmatprep.subr.mxu0 0.0
    %317 = vmatpush1.xpose.msra.mxu0 0.0
    %318 = vmatprep.subr.mxu0 0.0
    %319 = vmatpush1.xpose.msra.mxu0 0.0
    %320 = vmatprep.subr.mxu0 0.0
    %321 = vmatpush1.xpose.msra.mxu0 0.0
    %322 = vmatprep.subr.mxu0 0.0
    %323 = vmatpush1.xpose.msra.mxu0 0.0
    %324 = vmatprep.subr.mxu0 0.0
    %325 = vmatpush1.xpose.msra.mxu0 0.0
    %326 = vmatprep.subr.mxu0 0.0
    %327 = vmatpush1.xpose.msra.mxu0 0.0
    %328 = vmatprep.subr.mxu0 0.0
    %329 = vmatpush1.xpose.msra.mxu0 0.0
    %330 = vmatprep.mubr.f32.mxu0 0.0
    %v331 = vand.u32 %v34, 4294901760
    %v332 = vsub.f32 %v34, %v331
    %v333 = vand.u32 %v332, 4294901760
    %334 = vmatmul.mubr.f32.gmra.mrb[0].mxu0 %v333
    %v335 = vpop.f32.mrb[0].mxu0
    %v336 = vadd.f32 %v262, %v335
    %v337 = vpop.f32.mrb[0].mxu0
    %338 = vdwg.mxu0
    %339 = vmatprep.subr.mxu0 0.0
    %v340 = vand.u32 %v37, 4294901760
    %v341 = vsub.f32 %v37, %v340
    %v342 = vand.u32 %v341, 4294901760
    %343 = vmatpush1.xpose.msra.mxu0 %v342
    %344 = vmatprep.subr.mxu0 0.0
    %345 = vmatpush1.xpose.msra.mxu0 0.0
    %346 = vmatprep.subr.mxu0 0.0
    %347 = vmatpush1.xpose.msra.mxu0 0.0
    %348 = vmatprep.subr.mxu0 0.0
    %349 = vmatpush1.xpose.msra.mxu0 0.0
    %350 = vmatprep.subr.mxu0 0.0
    %351 = vmatpush1.xpose.msra.mxu0 0.0
    %352 = vmatprep.subr.mxu0 0.0
    %353 = vmatpush1.xpose.msra.mxu0 0.0
    %354 = vmatprep.subr.mxu0 0.0
    %355 = vmatpush1.xpose.msra.mxu0 0.0
    %356 = vmatprep.subr.mxu0 0.0
    %357 = vmatpush1.xpose.msra.mxu0 0.0
    %358 = vmatprep.subr.mxu0 0.0
    %359 = vmatpush1.xpose.msra.mxu0 0.0
    %360 = vmatprep.subr.mxu0 0.0
    %361 = vmatpush1.xpose.msra.mxu0 0.0
    %362 = vmatprep.subr.mxu0 0.0
    %363 = vmatpush1.xpose.msra.mxu0 0.0
    %364 = vmatprep.subr.mxu0 0.0
    %365 = vmatpush1.xpose.msra.mxu0 0.0
    %366 = vmatprep.subr.mxu0 0.0
    %367 = vmatpush1.xpose.msra.mxu0 0.0
    %368 = vmatprep.subr.mxu0 0.0
    %369 = vmatpush1.xpose.msra.mxu0 0.0
    %370 = vmatprep.subr.mxu0 0.0
    %371 = vmatpush1.xpose.msra.mxu0 0.0
    %372 = vmatprep.subr.mxu0 0.0
    %373 = vmatpush1.xpose.msra.mxu0 0.0
    %374 = vmatprep.subr.mxu0 0.0
    %375 = vmatpush1.xpose.msra.mxu0 0.0
    %376 = vmatprep.subr.mxu0 0.0
    %377 = vmatpush1.xpose.msra.mxu0 0.0
    %378 = vmatprep.subr.mxu0 0.0
    %379 = vmatpush1.xpose.msra.mxu0 0.0
    %380 = vmatprep.subr.mxu0 0.0
    %381 = vmatpush1.xpose.msra.mxu0 0.0
    %382 = vmatprep.subr.mxu0 0.0
    %383 = vmatpush1.xpose.msra.mxu0 0.0
    %384 = vmatprep.subr.mxu0 0.0
    %385 = vmatpush1.xpose.msra.mxu0 0.0
    %386 = vmatprep.subr.mxu0 0.0
    %387 = vmatpush1.xpose.msra.mxu0 0.0
    %388 = vmatprep.subr.mxu0 0.0
    %389 = vmatpush1.xpose.msra.mxu0 0.0
    %390 = vmatprep.subr.mxu0 0.0
    %391 = vmatpush1.xpose.msra.mxu0 0.0
    %392 = vmatprep.subr.mxu0 0.0
    %393 = vmatpush1.xpose.msra.mxu0 0.0
    %394 = vmatprep.subr.mxu0 0.0
    %395 = vmatpush1.xpose.msra.mxu0 0.0
    %396 = vmatprep.subr.mxu0 0.0
    %397 = vmatpush1.xpose.msra.mxu0 0.0
    %398 = vmatprep.subr.mxu0 0.0
    %399 = vmatpush1.xpose.msra.mxu0 0.0
    %400 = vmatprep.subr.mxu0 0.0
    %401 = vmatpush1.xpose.msra.mxu0 0.0
    %402 = vmatprep.subr.mxu0 0.0
    %403 = vmatpush1.xpose.msra.mxu0 0.0
    %404 = vmatprep.subr.mxu0 0.0
    %405 = vmatpush1.xpose.msra.mxu0 0.0
    %406 = vmatprep.mubr.f32.mxu0 0.0
    %v407 = vand.u32 %v34, 4294901760
    %408 = vmatmul.mubr.f32.gmra.mrb[0].mxu0 %v407
    %v409 = vpop.f32.mrb[0].mxu0
    %v410 = vadd.f32 %v336, %v409
    %v411 = vpop.f32.mrb[0].mxu0
    %412 = vdwg.mxu0
    %413 = vmatprep.subr.mxu0 0.0
    %v414 = vand.u32 %v37, 4294901760
    %415 = vmatpush1.xpose.msra.mxu0 %v414
    %416 = vmatprep.subr.mxu0 0.0
    %417 = vmatpush1.xpose.msra.mxu0 0.0
    %418 = vmatprep.subr.mxu0 0.0
    %419 = vmatpush1.xpose.msra.mxu0 0.0
    %420 = vmatprep.subr.mxu0 0.0
    %421 = vmatpush1.xpose.msra.mxu0 0.0
    %422 = vmatprep.subr.mxu0 0.0
    %423 = vmatpush1.xpose.msra.mxu0 0.0
    %424 = vmatprep.subr.mxu0 0.0
    %425 = vmatpush1.xpose.msra.mxu0 0.0
    %426 = vmatprep.subr.mxu0 0.0
    %427 = vmatpush1.xpose.msra.mxu0 0.0
    %428 = vmatprep.subr.mxu0 0.0
    %429 = vmatpush1.xpose.msra.mxu0 0.0
    %430 = vmatprep.subr.mxu0 0.0
    %431 = vmatpush1.xpose.msra.mxu0 0.0
    %432 = vmatprep.subr.mxu0 0.0
    %433 = vmatpush1.xpose.msra.mxu0 0.0
    %434 = vmatprep.subr.mxu0 0.0
    %435 = vmatpush1.xpose.msra.mxu0 0.0
    %436 = vmatprep.subr.mxu0 0.0
    %437 = vmatpush1.xpose.msra.mxu0 0.0
    %438 = vmatprep.subr.mxu0 0.0
    %439 = vmatpush1.xpose.msra.mxu0 0.0
    %440 = vmatprep.subr.mxu0 0.0
    %441 = vmatpush1.xpose.msra.mxu0 0.0
    %442 = vmatprep.subr.mxu0 0.0
    %443 = vmatpush1.xpose.msra.mxu0 0.0
    %444 = vmatprep.subr.mxu0 0.0
    %445 = vmatpush1.xpose.msra.mxu0 0.0
    %446 = vmatprep.subr.mxu0 0.0
    %447 = vmatpush1.xpose.msra.mxu0 0.0
    %448 = vmatprep.subr.mxu0 0.0
    %449 = vmatpush1.xpose.msra.mxu0 0.0
    %450 = vmatprep.subr.mxu0 0.0
    %451 = vmatpush1.xpose.msra.mxu0 0.0
    %452 = vmatprep.subr.mxu0 0.0
    %453 = vmatpush1.xpose.msra.mxu0 0.0
    %454 = vmatprep.subr.mxu0 0.0
    %455 = vmatpush1.xpose.msra.mxu0 0.0
    %456 = vmatprep.subr.mxu0 0.0
    %457 = vmatpush1.xpose.msra.mxu0 0.0
    %458 = vmatprep.subr.mxu0 0.0
    %459 = vmatpush1.xpose.msra.mxu0 0.0
    %460 = vmatprep.subr.mxu0 0.0
    %461 = vmatpush1.xpose.msra.mxu0 0.0
    %462 = vmatprep.subr.mxu0 0.0
    %463 = vmatpush1.xpose.msra.mxu0 0.0
    %464 = vmatprep.subr.mxu0 0.0
    %465 = vmatpush1.xpose.msra.mxu0 0.0
    %466 = vmatprep.subr.mxu0 0.0
    %467 = vmatpush1.xpose.msra.mxu0 0.0
    %468 = vmatprep.subr.mxu0 0.0
    %469 = vmatpush1.xpose.msra.mxu0 0.0
    %470 = vmatprep.subr.mxu0 0.0
    %471 = vmatpush1.xpose.msra.mxu0 0.0
    %472 = vmatprep.subr.mxu0 0.0
    %473 = vmatpush1.xpose.msra.mxu0 0.0
    %474 = vmatprep.subr.mxu0 0.0
    %475 = vmatpush1.xpose.msra.mxu0 0.0
    %476 = vmatprep.subr.mxu0 0.0
    %477 = vmatpush1.xpose.msra.mxu0 0.0
    %478 = vmatprep.mubr.f32.mxu0 0.0
    %v479 = vand.u32 %v34, 4294901760
    %480 = vmatmul.mubr.f32.gmra.mrb[0].mxu0 %v479
    %v481 = vpop.f32.mrb[0].mxu0
    %v482 = vadd.f32 %v410, %v481
    %v483 = vpop.f32.mrb[0].mxu0
    %484 = vdwg.mxu0
    %v486 = vsel %vm32, %v30, 0
    %488 = vmatprep.subr.mxu0 0.0
    %v489 = vand.u32 %v486, 4294901760
    %490 = vmatpush1.xpose.msra.mxu0 %v489
    %491 = vmatprep.subr.mxu0 0.0
    %492 = vmatpush1.xpose.msra.mxu0 0.0
    %493 = vmatprep.subr.mxu0 0.0
    %494 = vmatpush1.xpose.msra.mxu0 0.0
    %495 = vmatprep.subr.mxu0 0.0
    %496 = vmatpush1.xpose.msra.mxu0 0.0
    %497 = vmatprep.subr.mxu0 0.0
    %498 = vmatpush1.xpose.msra.mxu0 0.0
    %499 = vmatprep.subr.mxu0 0.0
    %500 = vmatpush1.xpose.msra.mxu0 0.0
    %501 = vmatprep.subr.mxu0 0.0
    %502 = vmatpush1.xpose.msra.mxu0 0.0
    %503 = vmatprep.subr.mxu0 0.0
    %504 = vmatpush1.xpose.msra.mxu0 0.0
    %505 = vmatprep.subr.mxu0 0.0
    %506 = vmatpush1.xpose.msra.mxu0 0.0
    %507 = vmatprep.subr.mxu0 0.0
    %508 = vmatpush1.xpose.msra.mxu0 0.0
    %509 = vmatprep.subr.mxu0 0.0
    %510 = vmatpush1.xpose.msra.mxu0 0.0
    %511 = vmatprep.subr.mxu0 0.0
    %512 = vmatpush1.xpose.msra.mxu0 0.0
    %513 = vmatprep.subr.mxu0 0.0
    %514 = vmatpush1.xpose.msra.mxu0 0.0
    %515 = vmatprep.subr.mxu0 0.0
    %516 = vmatpush1.xpose.msra.mxu0 0.0
    %517 = vmatprep.subr.mxu0 0.0
    %518 = vmatpush1.xpose.msra.mxu0 0.0
    %519 = vmatprep.subr.mxu0 0.0
    %520 = vmatpush1.xpose.msra.mxu0 0.0
    %521 = vmatprep.subr.mxu0 0.0
    %522 = vmatpush1.xpose.msra.mxu0 0.0
    %523 = vmatprep.subr.mxu0 0.0
    %524 = vmatpush1.xpose.msra.mxu0 0.0
    %525 = vmatprep.subr.mxu0 0.0
    %526 = vmatpush1.xpose.msra.mxu0 0.0
    %527 = vmatprep.subr.mxu0 0.0
    %528 = vmatpush1.xpose.msra.mxu0 0.0
    %529 = vmatprep.subr.mxu0 0.0
    %530 = vmatpush1.xpose.msra.mxu0 0.0
    %531 = vmatprep.subr.mxu0 0.0
    %532 = vmatpush1.xpose.msra.mxu0 0.0
    %533 = vmatprep.subr.mxu0 0.0
    %534 = vmatpush1.xpose.msra.mxu0 0.0
    %535 = vmatprep.subr.mxu0 0.0
    %536 = vmatpush1.xpose.msra.mxu0 0.0
    %537 = vmatprep.subr.mxu0 0.0
    %538 = vmatpush1.xpose.msra.mxu0 0.0
    %539 = vmatprep.subr.mxu0 0.0
    %540 = vmatpush1.xpose.msra.mxu0 0.0
    %541 = vmatprep.subr.mxu0 0.0
    %542 = vmatpush1.xpose.msra.mxu0 0.0
    %543 = vmatprep.subr.mxu0 0.0
    %544 = vmatpush1.xpose.msra.mxu0 0.0
    %545 = vmatprep.subr.mxu0 0.0
    %546 = vmatpush1.xpose.msra.mxu0 0.0
    %547 = vmatprep.subr.mxu0 0.0
    %548 = vmatpush1.xpose.msra.mxu0 0.0
    %549 = vmatprep.subr.mxu0 0.0
    %550 = vmatpush1.xpose.msra.mxu0 0.0
    %551 = vmatprep.subr.mxu0 0.0
    %552 = vmatpush1.xpose.msra.mxu0 0.0
    %553 = vmatprep.mubr.f32.mxu0 0.0
    %v554 = vand.u32 %v34, 4294901760
    %v555 = vsub.f32 %v34, %v554
    %v556 = vand.u32 %v555, 4294901760
    %v557 = vsub.f32 %v555, %v556
    %v558 = vand.u32 %v557, 4294901760
    %559 = vmatmul.mubr.f32.gmra.mrb[0].mxu0 %v558
    %v560 = vpop.f32.mrb[0].mxu0
    %v561 = vadd.f32 0.0, %v560
    %v562 = vpop.f32.mrb[0].mxu0
    %563 = vdwg.mxu0
    %564 = vmatprep.subr.mxu0 0.0
    %v565 = vand.u32 %v486, 4294901760
    %v566 = vsub.f32 %v486, %v565
    %v567 = vand.u32 %v566, 4294901760
    %v568 = vsub.f32 %v566, %v567
    %v569 = vand.u32 %v568, 4294901760
    %570 = vmatpush1.xpose.msra.mxu0 %v569
    %571 = vmatprep.subr.mxu0 0.0
    %572 = vmatpush1.xpose.msra.mxu0 0.0
    %573 = vmatprep.subr.mxu0 0.0
    %574 = vmatpush1.xpose.msra.mxu0 0.0
    %575 = vmatprep.subr.mxu0 0.0
    %576 = vmatpush1.xpose.msra.mxu0 0.0
    %577 = vmatprep.subr.mxu0 0.0
    %578 = vmatpush1.xpose.msra.mxu0 0.0
    %579 = vmatprep.subr.mxu0 0.0
    %580 = vmatpush1.xpose.msra.mxu0 0.0
    %581 = vmatprep.subr.mxu0 0.0
    %582 = vmatpush1.xpose.msra.mxu0 0.0
    %583 = vmatprep.subr.mxu0 0.0
    %584 = vmatpush1.xpose.msra.mxu0 0.0
    %585 = vmatprep.subr.mxu0 0.0
    %586 = vmatpush1.xpose.msra.mxu0 0.0
    %587 = vmatprep.subr.mxu0 0.0
    %588 = vmatpush1.xpose.msra.mxu0 0.0
    %589 = vmatprep.subr.mxu0 0.0
    %590 = vmatpush1.xpose.msra.mxu0 0.0
    %591 = vmatprep.subr.mxu0 0.0
    %592 = vmatpush1.xpose.msra.mxu0 0.0
    %593 = vmatprep.subr.mxu0 0.0
    %594 = vmatpush1.xpose.msra.mxu0 0.0
    %595 = vmatprep.subr.mxu0 0.0
    %596 = vmatpush1.xpose.msra.mxu0 0.0
    %597 = vmatprep.subr.mxu0 0.0
    %598 = vmatpush1.xpose.msra.mxu0 0.0
    %599 = vmatprep.subr.mxu0 0.0
    %600 = vmatpush1.xpose.msra.mxu0 0.0
    %601 = vmatprep.subr.mxu0 0.0
    %602 = vmatpush1.xpose.msra.mxu0 0.0
    %603 = vmatprep.subr.mxu0 0.0
    %604 = vmatpush1.xpose.msra.mxu0 0.0
    %605 = vmatprep.subr.mxu0 0.0
    %606 = vmatpush1.xpose.msra.mxu0 0.0
    %607 = vmatprep.subr.mxu0 0.0
    %608 = vmatpush1.xpose.msra.mxu0 0.0
    %609 = vmatprep.subr.mxu0 0.0
    %610 = vmatpush1.xpose.msra.mxu0 0.0
    %611 = vmatprep.subr.mxu0 0.0
    %612 = vmatpush1.xpose.msra.mxu0 0.0
    %613 = vmatprep.subr.mxu0 0.0
    %614 = vmatpush1.xpose.msra.mxu0 0.0
    %615 = vmatprep.subr.mxu0 0.0
    %616 = vmatpush1.xpose.msra.mxu0 0.0
    %617 = vmatprep.subr.mxu0 0.0
    %618 = vmatpush1.xpose.msra.mxu0 0.0
    %619 = vmatprep.subr.mxu0 0.0
    %620 = vmatpush1.xpose.msra.mxu0 0.0
    %621 = vmatprep.subr.mxu0 0.0
    %622 = vmatpush1.xpose.msra.mxu0 0.0
    %623 = vmatprep.subr.mxu0 0.0
    %624 = vmatpush1.xpose.msra.mxu0 0.0
    %625 = vmatprep.subr.mxu0 0.0
    %626 = vmatpush1.xpose.msra.mxu0 0.0
    %627 = vmatprep.subr.mxu0 0.0
    %628 = vmatpush1.xpose.msra.mxu0 0.0
    %629 = vmatprep.subr.mxu0 0.0
    %630 = vmatpush1.xpose.msra.mxu0 0.0
    %631 = vmatprep.subr.mxu0 0.0
    %632 = vmatpush1.xpose.msra.mxu0 0.0
    %633 = vmatprep.mubr.f32.mxu0 0.0
    %v634 = vand.u32 %v34, 4294901760
    %635 = vmatmul.mubr.f32.gmra.mrb[0].mxu0 %v634
    %v636 = vpop.f32.mrb[0].mxu0
    %v637 = vadd.f32 %v561, %v636
    %v638 = vpop.f32.mrb[0].mxu0
    %639 = vdwg.mxu0
    %640 = vmatprep.subr.mxu0 0.0
    %v641 = vand.u32 %v486, 4294901760
    %v642 = vsub.f32 %v486, %v641
    %643 = vmatpush1.xpose.msra.mxu0 %v642
    %644 = vmatprep.subr.mxu0 0.0
    %645 = vmatpush1.xpose.msra.mxu0 0.0
    %646 = vmatprep.subr.mxu0 0.0
    %647 = vmatpush1.xpose.msra.mxu0 0.0
    %648 = vmatprep.subr.mxu0 0.0
    %649 = vmatpush1.xpose.msra.mxu0 0.0
    %650 = vmatprep.subr.mxu0 0.0
    %651 = vmatpush1.xpose.msra.mxu0 0.0
    %652 = vmatprep.subr.mxu0 0.0
    %653 = vmatpush1.xpose.msra.mxu0 0.0
    %654 = vmatprep.subr.mxu0 0.0
    %655 = vmatpush1.xpose.msra.mxu0 0.0
    %656 = vmatprep.subr.mxu0 0.0
    %657 = vmatpush1.xpose.msra.mxu0 0.0
    %658 = vmatprep.subr.mxu0 0.0
    %659 = vmatpush1.xpose.msra.mxu0 0.0
    %660 = vmatprep.subr.mxu0 0.0
    %661 = vmatpush1.xpose.msra.mxu0 0.0
    %662 = vmatprep.subr.mxu0 0.0
    %663 = vmatpush1.xpose.msra.mxu0 0.0
    %664 = vmatprep.subr.mxu0 0.0
    %665 = vmatpush1.xpose.msra.mxu0 0.0
    %666 = vmatprep.subr.mxu0 0.0
    %667 = vmatpush1.xpose.msra.mxu0 0.0
    %668 = vmatprep.subr.mxu0 0.0
    %669 = vmatpush1.xpose.msra.mxu0 0.0
    %670 = vmatprep.subr.mxu0 0.0
    %671 = vmatpush1.xpose.msra.mxu0 0.0
    %672 = vmatprep.subr.mxu0 0.0
    %673 = vmatpush1.xpose.msra.mxu0 0.0
    %674 = vmatprep.subr.mxu0 0.0
    %675 = vmatpush1.xpose.msra.mxu0 0.0
    %676 = vmatprep.subr.mxu0 0.0
    %677 = vmatpush1.xpose.msra.mxu0 0.0
    %678 = vmatprep.subr.mxu0 0.0
    %679 = vmatpush1.xpose.msra.mxu0 0.0
    %680 = vmatprep.subr.mxu0 0.0
    %681 = vmatpush1.xpose.msra.mxu0 0.0
    %682 = vmatprep.subr.mxu0 0.0
    %683 = vmatpush1.xpose.msra.mxu0 0.0
    %684 = vmatprep.subr.mxu0 0.0
    %685 = vmatpush1.xpose.msra.mxu0 0.0
    %686 = vmatprep.subr.mxu0 0.0
    %687 = vmatpush1.xpose.msra.mxu0 0.0
    %688 = vmatprep.subr.mxu0 0.0
    %689 = vmatpush1.xpose.msra.mxu0 0.0
    %690 = vmatprep.subr.mxu0 0.0
    %691 = vmatpush1.xpose.msra.mxu0 0.0
    %692 = vmatprep.subr.mxu0 0.0
    %693 = vmatpush1.xpose.msra.mxu0 0.0
    %694 = vmatprep.subr.mxu0 0.0
    %695 = vmatpush1.xpose.msra.mxu0 0.0
    %696 = vmatprep.subr.mxu0 0.0
    %697 = vmatpush1.xpose.msra.mxu0 0.0
    %698 = vmatprep.subr.mxu0 0.0
    %699 = vmatpush1.xpose.msra.mxu0 0.0
    %700 = vmatprep.subr.mxu0 0.0
    %701 = vmatpush1.xpose.msra.mxu0 0.0
    %702 = vmatprep.subr.mxu0 0.0
    %703 = vmatpush1.xpose.msra.mxu0 0.0
    %704 = vmatprep.subr.mxu0 0.0
    %705 = vmatpush1.xpose.msra.mxu0 0.0
    %706 = vmatprep.mubr.f32.mxu0 0.0
    %v707 = vand.u32 %v34, 4294901760
    %v708 = vsub.f32 %v34, %v707
    %709 = vmatmul.mubr.f32.gmra.mrb[0].mxu0 %v708
    %v710 = vpop.f32.mrb[0].mxu0
    %v711 = vadd.f32 %v637, %v710
    %v712 = vpop.f32.mrb[0].mxu0
    %713 = vdwg.mxu0
    %714 = vmatprep.subr.mxu0 0.0
    %v715 = vand.u32 %v486, 4294901760
    %716 = vmatpush1.xpose.msra.mxu0 %v715
    %717 = vmatprep.subr.mxu0 0.0
    %718 = vmatpush1.xpose.msra.mxu0 0.0
    %719 = vmatprep.subr.mxu0 0.0
    %720 = vmatpush1.xpose.msra.mxu0 0.0
    %721 = vmatprep.subr.mxu0 0.0
    %722 = vmatpush1.xpose.msra.mxu0 0.0
    %723 = vmatprep.subr.mxu0 0.0
    %724 = vmatpush1.xpose.msra.mxu0 0.0
    %725 = vmatprep.subr.mxu0 0.0
    %726 = vmatpush1.xpose.msra.mxu0 0.0
    %727 = vmatprep.subr.mxu0 0.0
    %728 = vmatpush1.xpose.msra.mxu0 0.0
    %729 = vmatprep.subr.mxu0 0.0
    %730 = vmatpush1.xpose.msra.mxu0 0.0
    %731 = vmatprep.subr.mxu0 0.0
    %732 = vmatpush1.xpose.msra.mxu0 0.0
    %733 = vmatprep.subr.mxu0 0.0
    %734 = vmatpush1.xpose.msra.mxu0 0.0
    %735 = vmatprep.subr.mxu0 0.0
    %736 = vmatpush1.xpose.msra.mxu0 0.0
    %737 = vmatprep.subr.mxu0 0.0
    %738 = vmatpush1.xpose.msra.mxu0 0.0
    %739 = vmatprep.subr.mxu0 0.0
    %740 = vmatpush1.xpose.msra.mxu0 0.0
    %741 = vmatprep.subr.mxu0 0.0
    %742 = vmatpush1.xpose.msra.mxu0 0.0
    %743 = vmatprep.subr.mxu0 0.0
    %744 = vmatpush1.xpose.msra.mxu0 0.0
    %745 = vmatprep.subr.mxu0 0.0
    %746 = vmatpush1.xpose.msra.mxu0 0.0
    %747 = vmatprep.subr.mxu0 0.0
    %748 = vmatpush1.xpose.msra.mxu0 0.0
    %749 = vmatprep.subr.mxu0 0.0
    %750 = vmatpush1.xpose.msra.mxu0 0.0
    %751 = vmatprep.subr.mxu0 0.0
    %752 = vmatpush1.xpose.msra.mxu0 0.0
    %753 = vmatprep.subr.mxu0 0.0
    %754 = vmatpush1.xpose.msra.mxu0 0.0
    %755 = vmatprep.subr.mxu0 0.0
    %756 = vmatpush1.xpose.msra.mxu0 0.0
    %757 = vmatprep.subr.mxu0 0.0
    %758 = vmatpush1.xpose.msra.mxu0 0.0
    %759 = vmatprep.subr.mxu0 0.0
    %760 = vmatpush1.xpose.msra.mxu0 0.0
    %761 = vmatprep.subr.mxu0 0.0
    %762 = vmatpush1.xpose.msra.mxu0 0.0
    %763 = vmatprep.subr.mxu0 0.0
    %764 = vmatpush1.xpose.msra.mxu0 0.0
    %765 = vmatprep.subr.mxu0 0.0
    %766 = vmatpush1.xpose.msra.mxu0 0.0
    %767 = vmatprep.subr.mxu0 0.0
    %768 = vmatpush1.xpose.msra.mxu0 0.0
    %769 = vmatprep.subr.mxu0 0.0
    %770 = vmatpush1.xpose.msra.mxu0 0.0
    %771 = vmatprep.subr.mxu0 0.0
    %772 = vmatpush1.xpose.msra.mxu0 0.0
    %773 = vmatprep.subr.mxu0 0.0
    %774 = vmatpush1.xpose.msra.mxu0 0.0
    %775 = vmatprep.subr.mxu0 0.0
    %776 = vmatpush1.xpose.msra.mxu0 0.0
    %777 = vmatprep.subr.mxu0 0.0
    %778 = vmatpush1.xpose.msra.mxu0 0.0
    %779 = vmatprep.mubr.f32.mxu0 0.0
    %v780 = vand.u32 %v34, 4294901760
    %v781 = vsub.f32 %v34, %v780
    %v782 = vand.u32 %v781, 4294901760
    %783 = vmatmul.mubr.f32.gmra.mrb[0].mxu0 %v782
    %v784 = vpop.f32.mrb[0].mxu0
    %v785 = vadd.f32 %v711, %v784
    %v786 = vpop.f32.mrb[0].mxu0
    %787 = vdwg.mxu0
    %788 = vmatprep.subr.mxu0 0.0
    %v789 = vand.u32 %v486, 4294901760
    %v790 = vsub.f32 %v486, %v789
    %v791 = vand.u32 %v790, 4294901760
    %792 = vmatpush1.xpose.msra.mxu0 %v791
    %793 = vmatprep.subr.mxu0 0.0
    %794 = vmatpush1.xpose.msra.mxu0 0.0
    %795 = vmatprep.subr.mxu0 0.0
    %796 = vmatpush1.xpose.msra.mxu0 0.0
    %797 = vmatprep.subr.mxu0 0.0
    %798 = vmatpush1.xpose.msra.mxu0 0.0
    %799 = vmatprep.subr.mxu0 0.0
    %800 = vmatpush1.xpose.msra.mxu0 0.0
    %801 = vmatprep.subr.mxu0 0.0
    %802 = vmatpush1.xpose.msra.mxu0 0.0
    %803 = vmatprep.subr.mxu0 0.0
    %804 = vmatpush1.xpose.msra.mxu0 0.0
    %805 = vmatprep.subr.mxu0 0.0
    %806 = vmatpush1.xpose.msra.mxu0 0.0
    %807 = vmatprep.subr.mxu0 0.0
    %808 = vmatpush1.xpose.msra.mxu0 0.0
    %809 = vmatprep.subr.mxu0 0.0
    %810 = vmatpush1.xpose.msra.mxu0 0.0
    %811 = vmatprep.subr.mxu0 0.0
    %812 = vmatpush1.xpose.msra.mxu0 0.0
    %813 = vmatprep.subr.mxu0 0.0
    %814 = vmatpush1.xpose.msra.mxu0 0.0
    %815 = vmatprep.subr.mxu0 0.0
    %816 = vmatpush1.xpose.msra.mxu0 0.0
    %817 = vmatprep.subr.mxu0 0.0
    %818 = vmatpush1.xpose.msra.mxu0 0.0
    %819 = vmatprep.subr.mxu0 0.0
    %820 = vmatpush1.xpose.msra.mxu0 0.0
    %821 = vmatprep.subr.mxu0 0.0
    %822 = vmatpush1.xpose.msra.mxu0 0.0
    %823 = vmatprep.subr.mxu0 0.0
    %824 = vmatpush1.xpose.msra.mxu0 0.0
    %825 = vmatprep.subr.mxu0 0.0
    %826 = vmatpush1.xpose.msra.mxu0 0.0
    %827 = vmatprep.subr.mxu0 0.0
    %828 = vmatpush1.xpose.msra.mxu0 0.0
    %829 = vmatprep.subr.mxu0 0.0
    %830 = vmatpush1.xpose.msra.mxu0 0.0
    %831 = vmatprep.subr.mxu0 0.0
    %832 = vmatpush1.xpose.msra.mxu0 0.0
    %833 = vmatprep.subr.mxu0 0.0
    %834 = vmatpush1.xpose.msra.mxu0 0.0
    %835 = vmatprep.subr.mxu0 0.0
    %836 = vmatpush1.xpose.msra.mxu0 0.0
    %837 = vmatprep.subr.mxu0 0.0
    %838 = vmatpush1.xpose.msra.mxu0 0.0
    %839 = vmatprep.subr.mxu0 0.0
    %840 = vmatpush1.xpose.msra.mxu0 0.0
    %841 = vmatprep.subr.mxu0 0.0
    %842 = vmatpush1.xpose.msra.mxu0 0.0
    %843 = vmatprep.subr.mxu0 0.0
    %844 = vmatpush1.xpose.msra.mxu0 0.0
    %845 = vmatprep.subr.mxu0 0.0
    %846 = vmatpush1.xpose.msra.mxu0 0.0
    %847 = vmatprep.subr.mxu0 0.0
    %848 = vmatpush1.xpose.msra.mxu0 0.0
    %849 = vmatprep.subr.mxu0 0.0
    %850 = vmatpush1.xpose.msra.mxu0 0.0
    %851 = vmatprep.subr.mxu0 0.0
    %852 = vmatpush1.xpose.msra.mxu0 0.0
    %853 = vmatprep.subr.mxu0 0.0
    %854 = vmatpush1.xpose.msra.mxu0 0.0
    %855 = vmatprep.mubr.f32.mxu0 0.0
    %v856 = vand.u32 %v34, 4294901760
    %857 = vmatmul.mubr.f32.gmra.mrb[0].mxu0 %v856
    %v858 = vpop.f32.mrb[0].mxu0
    %v859 = vadd.f32 %v785, %v858
    %v860 = vpop.f32.mrb[0].mxu0
    %861 = vdwg.mxu0
    %862 = vmatprep.subr.mxu0 0.0
    %v863 = vand.u32 %v486, 4294901760
    %864 = vmatpush1.xpose.msra.mxu0 %v863
    %865 = vmatprep.subr.mxu0 0.0
    %866 = vmatpush1.xpose.msra.mxu0 0.0
    %867 = vmatprep.subr.mxu0 0.0
    %868 = vmatpush1.xpose.msra.mxu0 0.0
    %869 = vmatprep.subr.mxu0 0.0
    %870 = vmatpush1.xpose.msra.mxu0 0.0
    %871 = vmatprep.subr.mxu0 0.0
    %872 = vmatpush1.xpose.msra.mxu0 0.0
    %873 = vmatprep.subr.mxu0 0.0
    %874 = vmatpush1.xpose.msra.mxu0 0.0
    %875 = vmatprep.subr.mxu0 0.0
    %876 = vmatpush1.xpose.msra.mxu0 0.0
    %877 = vmatprep.subr.mxu0 0.0
    %878 = vmatpush1.xpose.msra.mxu0 0.0
    %879 = vmatprep.subr.mxu0 0.0
    %880 = vmatpush1.xpose.msra.mxu0 0.0
    %881 = vmatprep.subr.mxu0 0.0
    %882 = vmatpush1.xpose.msra.mxu0 0.0
    %883 = vmatprep.subr.mxu0 0.0
    %884 = vmatpush1.xpose.msra.mxu0 0.0
    %885 = vmatprep.subr.mxu0 0.0
    %886 = vmatpush1.xpose.msra.mxu0 0.0
    %887 = vmatprep.subr.mxu0 0.0
    %888 = vmatpush1.xpose.msra.mxu0 0.0
    %889 = vmatprep.subr.mxu0 0.0
    %890 = vmatpush1.xpose.msra.mxu0 0.0
    %891 = vmatprep.subr.mxu0 0.0
    %892 = vmatpush1.xpose.msra.mxu0 0.0
    %893 = vmatprep.subr.mxu0 0.0
    %894 = vmatpush1.xpose.msra.mxu0 0.0
    %895 = vmatprep.subr.mxu0 0.0
    %896 = vmatpush1.xpose.msra.mxu0 0.0
    %897 = vmatprep.subr.mxu0 0.0
    %898 = vmatpush1.xpose.msra.mxu0 0.0
    %899 = vmatprep.subr.mxu0 0.0
    %900 = vmatpush1.xpose.msra.mxu0 0.0
    %901 = vmatprep.subr.mxu0 0.0
    %902 = vmatpush1.xpose.msra.mxu0 0.0
    %903 = vmatprep.subr.mxu0 0.0
    %904 = vmatpush1.xpose.msra.mxu0 0.0
    %905 = vmatprep.subr.mxu0 0.0
    %906 = vmatpush1.xpose.msra.mxu0 0.0
    %907 = vmatprep.subr.mxu0 0.0
    %908 = vmatpush1.xpose.msra.mxu0 0.0
    %909 = vmatprep.subr.mxu0 0.0
    %910 = vmatpush1.xpose.msra.mxu0 0.0
    %911 = vmatprep.subr.mxu0 0.0
    %912 = vmatpush1.xpose.msra.mxu0 0.0
    %913 = vmatprep.subr.mxu0 0.0
    %914 = vmatpush1.xpose.msra.mxu0 0.0
    %915 = vmatprep.subr.mxu0 0.0
    %916 = vmatpush1.xpose.msra.mxu0 0.0
    %917 = vmatprep.subr.mxu0 0.0
    %918 = vmatpush1.xpose.msra.mxu0 0.0
    %919 = vmatprep.subr.mxu0 0.0
    %920 = vmatpush1.xpose.msra.mxu0 0.0
    %921 = vmatprep.subr.mxu0 0.0
    %922 = vmatpush1.xpose.msra.mxu0 0.0
    %923 = vmatprep.subr.mxu0 0.0
    %924 = vmatpush1.xpose.msra.mxu0 0.0
    %925 = vmatprep.subr.mxu0 0.0
    %926 = vmatpush1.xpose.msra.mxu0 0.0
    %927 = vmatprep.mubr.f32.mxu0 0.0
    %v928 = vand.u32 %v34, 4294901760
    %929 = vmatmul.mubr.f32.gmra.mrb[0].mxu0 %v928
    %v930 = vpop.f32.mrb[0].mxu0
    %v931 = vadd.f32 %v859, %v930
    %v932 = vpop.f32.mrb[0].mxu0
    %933 = vdwg.mxu0
    %vm934 = vcmask 57344
    %v935 = vsel %vm934, %v482, -inf
    %936 = vmax.xlane.f32.xlu0 %v935
    %v937 = vpop.xlane.xlu0 %936
    %v938 = vsel %vm934, %v931, -inf
    %939 = vmax.xlane.f32.xlu0 %v938
    %v940 = vpop.xlane.xlu0 %939
    %v941 = vsub.f32 %v482, %v937
    %v942 = vsub.f32 %v931, %v940
    %v943 = vmul.f32 %v941, 1.442695
    %v944 = vpow.pop %v943
    %v945 = vmul.f32 %v942, 1.442695
    %v946 = vpow.pop %v945
    %v947 = vsel %vm934, %v944, 0.0
    %948 = vadd.xlane.f32.xlu0 %v947
    %v949 = vpop.xlane.xlu0 %948
    %v950 = vsel %vm934, %v946, 0.0
    %951 = vadd.xlane.f32.xlu0 %v950
    %v952 = vpop.xlane.xlu0 %951
    %v953 = vrcp.pop %v949
    %v954 = vmul.f32 %v944, %v953
    %v955 = vrcp.pop %v952
    %v956 = vmul.f32 %v946, %v955
    %vm957 = vcmask 64512
    %v959 = vsel %vm957, %v954, 0
    %961 = vmatprep.subr.mxu0 0.0
    %v962 = vand.u32 %v29, 4294901760
    %963 = vmatpush1.msra.mxu0 %v962
    %964 = vmatprep.subr.mxu0 0.0
    %965 = vmatpush1.msra.mxu0 0.0
    %966 = vmatprep.subr.mxu0 0.0
    %967 = vmatpush1.msra.mxu0 0.0
    %968 = vmatprep.subr.mxu0 0.0
    %969 = vmatpush1.msra.mxu0 0.0
    %970 = vmatprep.subr.mxu0 0.0
    %971 = vmatpush1.msra.mxu0 0.0
    %972 = vmatprep.subr.mxu0 0.0
    %973 = vmatpush1.msra.mxu0 0.0
    %974 = vmatprep.subr.mxu0 0.0
    %975 = vmatpush1.msra.mxu0 0.0
    %976 = vmatprep.subr.mxu0 0.0
    %977 = vmatpush1.msra.mxu0 0.0
    %978 = vmatprep.subr.mxu0 0.0
    %979 = vmatpush1.msra.mxu0 0.0
    %980 = vmatprep.subr.mxu0 0.0
    %981 = vmatpush1.msra.mxu0 0.0
    %982 = vmatprep.subr.mxu0 0.0
    %983 = vmatpush1.msra.mxu0 0.0
    %984 = vmatprep.subr.mxu0 0.0
    %985 = vmatpush1.msra.mxu0 0.0
    %986 = vmatprep.subr.mxu0 0.0
    %987 = vmatpush1.msra.mxu0 0.0
    %988 = vmatprep.subr.mxu0 0.0
    %989 = vmatpush1.msra.mxu0 0.0
    %990 = vmatprep.subr.mxu0 0.0
    %991 = vmatpush1.msra.mxu0 0.0
    %992 = vmatprep.subr.mxu0 0.0
    %993 = vmatpush1.msra.mxu0 0.0
    %994 = vmatprep.subr.mxu0 0.0
    %995 = vmatpush1.msra.mxu0 0.0
    %996 = vmatprep.subr.mxu0 0.0
    %997 = vmatpush1.msra.mxu0 0.0
    %998 = vmatprep.subr.mxu0 0.0
    %999 = vmatpush1.msra.mxu0 0.0
    %1000 = vmatprep.subr.mxu0 0.0
    %1001 = vmatpush1.msra.mxu0 0.0
    %1002 = vmatprep.subr.mxu0 0.0
    %1003 = vmatpush1.msra.mxu0 0.0
    %1004 = vmatprep.subr.mxu0 0.0
    %1005 = vmatpush1.msra.mxu0 0.0
    %1006 = vmatprep.subr.mxu0 0.0
    %1007 = vmatpush1.msra.mxu0 0.0
    %1008 = vmatprep.subr.mxu0 0.0
    %1009 = vmatpush1.msra.mxu0 0.0
    %1010 = vmatprep.subr.mxu0 0.0
    %1011 = vmatpush1.msra.mxu0 0.0
    %1012 = vmatprep.subr.mxu0 0.0
    %1013 = vmatpush1.msra.mxu0 0.0
    %1014 = vmatprep.subr.mxu0 0.0
    %1015 = vmatpush1.msra.mxu0 0.0
    %1016 = vmatprep.subr.mxu0 0.0
    %1017 = vmatpush1.msra.mxu0 0.0
    %1018 = vmatprep.subr.mxu0 0.0
    %1019 = vmatpush1.msra.mxu0 0.0
    %1020 = vmatprep.subr.mxu0 0.0
    %1021 = vmatpush1.msra.mxu0 0.0
    %1022 = vmatprep.subr.mxu0 0.0
    %1023 = vmatpush1.msra.mxu0 0.0
    %1024 = vmatprep.subr.mxu0 0.0
    %1025 = vmatpush1.msra.mxu0 0.0
    %1026 = vmatprep.mubr.f32.mxu0 0.0
    %v1027 = vand.u32 %v959, 4294901760
    %v1028 = vsub.f32 %v959, %v1027
    %v1029 = vand.u32 %v1028, 4294901760
    %v1030 = vsub.f32 %v1028, %v1029
    %v1031 = vand.u32 %v1030, 4294901760
    %1032 = vmatmul.mubr.f32.gmra.mrb[0].mxu0 %v1031
    %v1033 = vpop.f32.mrb[0].mxu0
    %v1034 = vadd.f32 0.0, %v1033
    %v1035 = vpop.f32.mrb[0].mxu0
    %1036 = vdwg.mxu0
    %1037 = vmatprep.subr.mxu0 0.0
    %v1038 = vand.u32 %v29, 4294901760
    %v1039 = vsub.f32 %v29, %v1038
    %v1040 = vand.u32 %v1039, 4294901760
    %v1041 = vsub.f32 %v1039, %v1040
    %v1042 = vand.u32 %v1041, 4294901760
    %1043 = vmatpush1.msra.mxu0 %v1042
    %1044 = vmatprep.subr.mxu0 0.0
    %1045 = vmatpush1.msra.mxu0 0.0
    %1046 = vmatprep.subr.mxu0 0.0
    %1047 = vmatpush1.msra.mxu0 0.0
    %1048 = vmatprep.subr.mxu0 0.0
    %1049 = vmatpush1.msra.mxu0 0.0
    %1050 = vmatprep.subr.mxu0 0.0
    %1051 = vmatpush1.msra.mxu0 0.0
    %1052 = vmatprep.subr.mxu0 0.0
    %1053 = vmatpush1.msra.mxu0 0.0
    %1054 = vmatprep.subr.mxu0 0.0
    %1055 = vmatpush1.msra.mxu0 0.0
    %1056 = vmatprep.subr.mxu0 0.0
    %1057 = vmatpush1.msra.mxu0 0.0
    %1058 = vmatprep.subr.mxu0 0.0
    %1059 = vmatpush1.msra.mxu0 0.0
    %1060 = vmatprep.subr.mxu0 0.0
    %1061 = vmatpush1.msra.mxu0 0.0
    %1062 = vmatprep.subr.mxu0 0.0
    %1063 = vmatpush1.msra.mxu0 0.0
    %1064 = vmatprep.subr.mxu0 0.0
    %1065 = vmatpush1.msra.mxu0 0.0
    %1066 = vmatprep.subr.mxu0 0.0
    %1067 = vmatpush1.msra.mxu0 0.0
    %1068 = vmatprep.subr.mxu0 0.0
    %1069 = vmatpush1.msra.mxu0 0.0
    %1070 = vmatprep.subr.mxu0 0.0
    %1071 = vmatpush1.msra.mxu0 0.0
    %1072 = vmatprep.subr.mxu0 0.0
    %1073 = vmatpush1.msra.mxu0 0.0
    %1074 = vmatprep.subr.mxu0 0.0
    %1075 = vmatpush1.msra.mxu0 0.0
    %1076 = vmatprep.subr.mxu0 0.0
    %1077 = vmatpush1.msra.mxu0 0.0
    %1078 = vmatprep.subr.mxu0 0.0
    %1079 = vmatpush1.msra.mxu0 0.0
    %1080 = vmatprep.subr.mxu0 0.0
    %1081 = vmatpush1.msra.mxu0 0.0
    %1082 = vmatprep.subr.mxu0 0.0
    %1083 = vmatpush1.msra.mxu0 0.0
    %1084 = vmatprep.subr.mxu0 0.0
    %1085 = vmatpush1.msra.mxu0 0.0
    %1086 = vmatprep.subr.mxu0 0.0
    %1087 = vmatpush1.msra.mxu0 0.0
    %1088 = vmatprep.subr.mxu0 0.0
    %1089 = vmatpush1.msra.mxu0 0.0
    %1090 = vmatprep.subr.mxu0 0.0
    %1091 = vmatpush1.msra.mxu0 0.0
    %1092 = vmatprep.subr.mxu0 0.0
    %1093 = vmatpush1.msra.mxu0 0.0
    %1094 = vmatprep.subr.mxu0 0.0
    %1095 = vmatpush1.msra.mxu0 0.0
    %1096 = vmatprep.subr.mxu0 0.0
    %1097 = vmatpush1.msra.mxu0 0.0
    %1098 = vmatprep.subr.mxu0 0.0
    %1099 = vmatpush1.msra.mxu0 0.0
    %1100 = vmatprep.subr.mxu0 0.0
    %1101 = vmatpush1.msra.mxu0 0.0
    %1102 = vmatprep.subr.mxu0 0.0
    %1103 = vmatpush1.msra.mxu0 0.0
    %1104 = vmatprep.subr.mxu0 0.0
    %1105 = vmatpush1.msra.mxu0 0.0
    %1106 = vmatprep.mubr.f32.mxu0 0.0
    %v1107 = vand.u32 %v959, 4294901760
    %1108 = vmatmul.mubr.f32.gmra.mrb[0].mxu0 %v1107
    %v1109 = vpop.f32.mrb[0].mxu0
    %v1110 = vadd.f32 %v1034, %v1109
    %v1111 = vpop.f32.mrb[0].mxu0
    %1112 = vdwg.mxu0
    %1113 = vmatprep.subr.mxu0 0.0
    %v1114 = vand.u32 %v29, 4294901760
    %v1115 = vsub.f32 %v29, %v1114
    %1116 = vmatpush1.msra.mxu0 %v1115
    %1117 = vmatprep.subr.mxu0 0.0
    %1118 = vmatpush1.msra.mxu0 0.0
    %1119 = vmatprep.subr.mxu0 0.0
    %1120 = vmatpush1.msra.mxu0 0.0
    %1121 = vmatprep.subr.mxu0 0.0
    %1122 = vmatpush1.msra.mxu0 0.0
    %1123 = vmatprep.subr.mxu0 0.0
    %1124 = vmatpush1.msra.mxu0 0.0
    %1125 = vmatprep.subr.mxu0 0.0
    %1126 = vmatpush1.msra.mxu0 0.0
    %1127 = vmatprep.subr.mxu0 0.0
    %1128 = vmatpush1.msra.mxu0 0.0
    %1129 = vmatprep.subr.mxu0 0.0
    %1130 = vmatpush1.msra.mxu0 0.0
    %1131 = vmatprep.subr.mxu0 0.0
    %1132 = vmatpush1.msra.mxu0 0.0
    %1133 = vmatprep.subr.mxu0 0.0
    %1134 = vmatpush1.msra.mxu0 0.0
    %1135 = vmatprep.subr.mxu0 0.0
    %1136 = vmatpush1.msra.mxu0 0.0
    %1137 = vmatprep.subr.mxu0 0.0
    %1138 = vmatpush1.msra.mxu0 0.0
    %1139 = vmatprep.subr.mxu0 0.0
    %1140 = vmatpush1.msra.mxu0 0.0
    %1141 = vmatprep.subr.mxu0 0.0
    %1142 = vmatpush1.msra.mxu0 0.0
    %1143 = vmatprep.subr.mxu0 0.0
    %1144 = vmatpush1.msra.mxu0 0.0
    %1145 = vmatprep.subr.mxu0 0.0
    %1146 = vmatpush1.msra.mxu0 0.0
    %1147 = vmatprep.subr.mxu0 0.0
    %1148 = vmatpush1.msra.mxu0 0.0
    %1149 = vmatprep.subr.mxu0 0.0
    %1150 = vmatpush1.msra.mxu0 0.0
    %1151 = vmatprep.subr.mxu0 0.0
    %1152 = vmatpush1.msra.mxu0 0.0
    %1153 = vmatprep.subr.mxu0 0.0
    %1154 = vmatpush1.msra.mxu0 0.0
    %1155 = vmatprep.subr.mxu0 0.0
    %1156 = vmatpush1.msra.mxu0 0.0
    %1157 = vmatprep.subr.mxu0 0.0
    %1158 = vmatpush1.msra.mxu0 0.0
    %1159 = vmatprep.subr.mxu0 0.0
    %1160 = vmatpush1.msra.mxu0 0.0
    %1161 = vmatprep.subr.mxu0 0.0
    %1162 = vmatpush1.msra.mxu0 0.0
    %1163 = vmatprep.subr.mxu0 0.0
    %1164 = vmatpush1.msra.mxu0 0.0
    %1165 = vmatprep.subr.mxu0 0.0
    %1166 = vmatpush1.msra.mxu0 0.0
    %1167 = vmatprep.subr.mxu0 0.0
    %1168 = vmatpush1.msra.mxu0 0.0
    %1169 = vmatprep.subr.mxu0 0.0
    %1170 = vmatpush1.msra.mxu0 0.0
    %1171 = vmatprep.subr.mxu0 0.0
    %1172 = vmatpush1.msra.mxu0 0.0
    %1173 = vmatprep.subr.mxu0 0.0
    %1174 = vmatpush1.msra.mxu0 0.0
    %1175 = vmatprep.subr.mxu0 0.0
    %1176 = vmatpush1.msra.mxu0 0.0
    %1177 = vmatprep.subr.mxu0 0.0
    %1178 = vmatpush1.msra.mxu0 0.0
    %1179 = vmatprep.mubr.f32.mxu0 0.0
    %v1180 = vand.u32 %v959, 4294901760
    %v1181 = vsub.f32 %v959, %v1180
    %1182 = vmatmul.mubr.f32.gmra.mrb[0].mxu0 %v1181
    %v1183 = vpop.f32.mrb[0].mxu0
    %v1184 = vadd.f32 %v1110, %v1183
    %v1185 = vpop.f32.mrb[0].mxu0
    %1186 = vdwg.mxu0
    %1187 = vmatprep.subr.mxu0 0.0
    %v1188 = vand.u32 %v29, 4294901760
    %1189 = vmatpush1.msra.mxu0 %v1188
    %1190 = vmatprep.subr.mxu0 0.0
    %1191 = vmatpush1.msra.mxu0 0.0
    %1192 = vmatprep.subr.mxu0 0.0
    %1193 = vmatpush1.msra.mxu0 0.0
    %1194 = vmatprep.subr.mxu0 0.0
    %1195 = vmatpush1.msra.mxu0 0.0
    %1196 = vmatprep.subr.mxu0 0.0
    %1197 = vmatpush1.msra.mxu0 0.0
    %1198 = vmatprep.subr.mxu0 0.0
    %1199 = vmatpush1.msra.mxu0 0.0
    %1200 = vmatprep.subr.mxu0 0.0
    %1201 = vmatpush1.msra.mxu0 0.0
    %1202 = vmatprep.subr.mxu0 0.0
    %1203 = vmatpush1.msra.mxu0 0.0
    %1204 = vmatprep.subr.mxu0 0.0
    %1205 = vmatpush1.msra.mxu0 0.0
    %1206 = vmatprep.subr.mxu0 0.0
    %1207 = vmatpush1.msra.mxu0 0.0
    %1208 = vmatprep.subr.mxu0 0.0
    %1209 = vmatpush1.msra.mxu0 0.0
    %1210 = vmatprep.subr.mxu0 0.0
    %1211 = vmatpush1.msra.mxu0 0.0
    %1212 = vmatprep.subr.mxu0 0.0
    %1213 = vmatpush1.msra.mxu0 0.0
    %1214 = vmatprep.subr.mxu0 0.0
    %1215 = vmatpush1.msra.mxu0 0.0
    %1216 = vmatprep.subr.mxu0 0.0
    %1217 = vmatpush1.msra.mxu0 0.0
    %1218 = vmatprep.subr.mxu0 0.0
    %1219 = vmatpush1.msra.mxu0 0.0
    %1220 = vmatprep.subr.mxu0 0.0
    %1221 = vmatpush1.msra.mxu0 0.0
    %1222 = vmatprep.subr.mxu0 0.0
    %1223 = vmatpush1.msra.mxu0 0.0
    %1224 = vmatprep.subr.mxu0 0.0
    %1225 = vmatpush1.msra.mxu0 0.0
    %1226 = vmatprep.subr.mxu0 0.0
    %1227 = vmatpush1.msra.mxu0 0.0
    %1228 = vmatprep.subr.mxu0 0.0
    %1229 = vmatpush1.msra.mxu0 0.0
    %1230 = vmatprep.subr.mxu0 0.0
    %1231 = vmatpush1.msra.mxu0 0.0
    %1232 = vmatprep.subr.mxu0 0.0
    %1233 = vmatpush1.msra.mxu0 0.0
    %1234 = vmatprep.subr.mxu0 0.0
    %1235 = vmatpush1.msra.mxu0 0.0
    %1236 = vmatprep.subr.mxu0 0.0
    %1237 = vmatpush1.msra.mxu0 0.0
    %1238 = vmatprep.subr.mxu0 0.0
    %1239 = vmatpush1.msra.mxu0 0.0
    %1240 = vmatprep.subr.mxu0 0.0
    %1241 = vmatpush1.msra.mxu0 0.0
    %1242 = vmatprep.subr.mxu0 0.0
    %1243 = vmatpush1.msra.mxu0 0.0
    %1244 = vmatprep.subr.mxu0 0.0
    %1245 = vmatpush1.msra.mxu0 0.0
    %1246 = vmatprep.subr.mxu0 0.0
    %1247 = vmatpush1.msra.mxu0 0.0
    %1248 = vmatprep.subr.mxu0 0.0
    %1249 = vmatpush1.msra.mxu0 0.0
    %1250 = vmatprep.subr.mxu0 0.0
    %1251 = vmatpush1.msra.mxu0 0.0
    %1252 = vmatprep.mubr.f32.mxu0 0.0
    %v1253 = vand.u32 %v959, 4294901760
    %v1254 = vsub.f32 %v959, %v1253
    %v1255 = vand.u32 %v1254, 4294901760
    %1256 = vmatmul.mubr.f32.gmra.mrb[0].mxu0 %v1255
    %v1257 = vpop.f32.mrb[0].mxu0
    %v1258 = vadd.f32 %v1184, %v1257
    %v1259 = vpop.f32.mrb[0].mxu0
    %1260 = vdwg.mxu0
    %1261 = vmatprep.subr.mxu0 0.0
    %v1262 = vand.u32 %v29, 4294901760
    %v1263 = vsub.f32 %v29, %v1262
    %v1264 = vand.u32 %v1263, 4294901760
    %1265 = vmatpush1.msra.mxu0 %v1264
    %1266 = vmatprep.subr.mxu0 0.0
    %1267 = vmatpush1.msra.mxu0 0.0
    %1268 = vmatprep.subr.mxu0 0.0
    %1269 = vmatpush1.msra.mxu0 0.0
    %1270 = vmatprep.subr.mxu0 0.0
    %1271 = vmatpush1.msra.mxu0 0.0
    %1272 = vmatprep.subr.mxu0 0.0
    %1273 = vmatpush1.msra.mxu0 0.0
    %1274 = vmatprep.subr.mxu0 0.0
    %1275 = vmatpush1.msra.mxu0 0.0
    %1276 = vmatprep.subr.mxu0 0.0
    %1277 = vmatpush1.msra.mxu0 0.0
    %1278 = vmatprep.subr.mxu0 0.0
    %1279 = vmatpush1.msra.mxu0 0.0
    %1280 = vmatprep.subr.mxu0 0.0
    %1281 = vmatpush1.msra.mxu0 0.0
    %1282 = vmatprep.subr.mxu0 0.0
    %1283 = vmatpush1.msra.mxu0 0.0
    %1284 = vmatprep.subr.mxu0 0.0
    %1285 = vmatpush1.msra.mxu0 0.0
    %1286 = vmatprep.subr.mxu0 0.0
    %1287 = vmatpush1.msra.mxu0 0.0
    %1288 = vmatprep.subr.mxu0 0.0
    %1289 = vmatpush1.msra.mxu0 0.0
    %1290 = vmatprep.subr.mxu0 0.0
    %1291 = vmatpush1.msra.mxu0 0.0
    %1292 = vmatprep.subr.mxu0 0.0
    %1293 = vmatpush1.msra.mxu0 0.0
    %1294 = vmatprep.subr.mxu0 0.0
    %1295 = vmatpush1.msra.mxu0 0.0
    %1296 = vmatprep.subr.mxu0 0.0
    %1297 = vmatpush1.msra.mxu0 0.0
    %1298 = vmatprep.subr.mxu0 0.0
    %1299 = vmatpush1.msra.mxu0 0.0
    %1300 = vmatprep.subr.mxu0 0.0
    %1301 = vmatpush1.msra.mxu0 0.0
    %1302 = vmatprep.subr.mxu0 0.0
    %1303 = vmatpush1.msra.mxu0 0.0
    %1304 = vmatprep.subr.mxu0 0.0
    %1305 = vmatpush1.msra.mxu0 0.0
    %1306 = vmatprep.subr.mxu0 0.0
    %1307 = vmatpush1.msra.mxu0 0.0
    %1308 = vmatprep.subr.mxu0 0.0
    %1309 = vmatpush1.msra.mxu0 0.0
    %1310 = vmatprep.subr.mxu0 0.0
    %1311 = vmatpush1.msra.mxu0 0.0
    %1312 = vmatprep.subr.mxu0 0.0
    %1313 = vmatpush1.msra.mxu0 0.0
    %1314 = vmatprep.subr.mxu0 0.0
    %1315 = vmatpush1.msra.mxu0 0.0
    %1316 = vmatprep.subr.mxu0 0.0
    %1317 = vmatpush1.msra.mxu0 0.0
    %1318 = vmatprep.subr.mxu0 0.0
    %1319 = vmatpush1.msra.mxu0 0.0
    %1320 = vmatprep.subr.mxu0 0.0
    %1321 = vmatpush1.msra.mxu0 0.0
    %1322 = vmatprep.subr.mxu0 0.0
    %1323 = vmatpush1.msra.mxu0 0.0
    %1324 = vmatprep.subr.mxu0 0.0
    %1325 = vmatpush1.msra.mxu0 0.0
    %1326 = vmatprep.subr.mxu0 0.0
    %1327 = vmatpush1.msra.mxu0 0.0
    %1328 = vmatprep.mubr.f32.mxu0 0.0
    %v1329 = vand.u32 %v959, 4294901760
    %1330 = vmatmul.mubr.f32.gmra.mrb[0].mxu0 %v1329
    %v1331 = vpop.f32.mrb[0].mxu0
    %v1332 = vadd.f32 %v1258, %v1331
    %v1333 = vpop.f32.mrb[0].mxu0
    %1334 = vdwg.mxu0
    %1335 = vmatprep.subr.mxu0 0.0
    %v1336 = vand.u32 %v29, 4294901760
    %1337 = vmatpush1.msra.mxu0 %v1336
    %1338 = vmatprep.subr.mxu0 0.0
    %1339 = vmatpush1.msra.mxu0 0.0
    %1340 = vmatprep.subr.mxu0 0.0
    %1341 = vmatpush1.msra.mxu0 0.0
    %1342 = vmatprep.subr.mxu0 0.0
    %1343 = vmatpush1.msra.mxu0 0.0
    %1344 = vmatprep.subr.mxu0 0.0
    %1345 = vmatpush1.msra.mxu0 0.0
    %1346 = vmatprep.subr.mxu0 0.0
    %1347 = vmatpush1.msra.mxu0 0.0
    %1348 = vmatprep.subr.mxu0 0.0
    %1349 = vmatpush1.msra.mxu0 0.0
    %1350 = vmatprep.subr.mxu0 0.0
    %1351 = vmatpush1.msra.mxu0 0.0
    %1352 = vmatprep.subr.mxu0 0.0
    %1353 = vmatpush1.msra.mxu0 0.0
    %1354 = vmatprep.subr.mxu0 0.0
    %1355 = vmatpush1.msra.mxu0 0.0
    %1356 = vmatprep.subr.mxu0 0.0
    %1357 = vmatpush1.msra.mxu0 0.0
    %1358 = vmatprep.subr.mxu0 0.0
    %1359 = vmatpush1.msra.mxu0 0.0
    %1360 = vmatprep.subr.mxu0 0.0
    %1361 = vmatpush1.msra.mxu0 0.0
    %1362 = vmatprep.subr.mxu0 0.0
    %1363 = vmatpush1.msra.mxu0 0.0
    %1364 = vmatprep.subr.mxu0 0.0
    %1365 = vmatpush1.msra.mxu0 0.0
    %1366 = vmatprep.subr.mxu0 0.0
    %1367 = vmatpush1.msra.mxu0 0.0
    %1368 = vmatprep.subr.mxu0 0.0
    %1369 = vmatpush1.msra.mxu0 0.0
    %1370 = vmatprep.subr.mxu0 0.0
    %1371 = vmatpush1.msra.mxu0 0.0
    %1372 = vmatprep.subr.mxu0 0.0
    %1373 = vmatpush1.msra.mxu0 0.0
    %1374 = vmatprep.subr.mxu0 0.0
    %1375 = vmatpush1.msra.mxu0 0.0
    %1376 = vmatprep.subr.mxu0 0.0
    %1377 = vmatpush1.msra.mxu0 0.0
    %1378 = vmatprep.subr.mxu0 0.0
    %1379 = vmatpush1.msra.mxu0 0.0
    %1380 = vmatprep.subr.mxu0 0.0
    %1381 = vmatpush1.msra.mxu0 0.0
    %1382 = vmatprep.subr.mxu0 0.0
    %1383 = vmatpush1.msra.mxu0 0.0
    %1384 = vmatprep.subr.mxu0 0.0
    %1385 = vmatpush1.msra.mxu0 0.0
    %1386 = vmatprep.subr.mxu0 0.0
    %1387 = vmatpush1.msra.mxu0 0.0
    %1388 = vmatprep.subr.mxu0 0.0
    %1389 = vmatpush1.msra.mxu0 0.0
    %1390 = vmatprep.subr.mxu0 0.0
    %1391 = vmatpush1.msra.mxu0 0.0
    %1392 = vmatprep.subr.mxu0 0.0
    %1393 = vmatpush1.msra.mxu0 0.0
    %1394 = vmatprep.subr.mxu0 0.0
    %1395 = vmatpush1.msra.mxu0 0.0
    %1396 = vmatprep.subr.mxu0 0.0
    %1397 = vmatpush1.msra.mxu0 0.0
    %1398 = vmatprep.subr.mxu0 0.0
    %1399 = vmatpush1.msra.mxu0 0.0
    %1400 = vmatprep.mubr.f32.mxu0 0.0
    %v1401 = vand.u32 %v959, 4294901760
    %1402 = vmatmul.mubr.f32.gmra.mrb[0].mxu0 %v1401
    %v1403 = vpop.f32.mrb[0].mxu0
    %v1404 = vadd.f32 %v1332, %v1403
    %v1405 = vpop.f32.mrb[0].mxu0
    %1406 = vdwg.mxu0
    %v1408 = vsel %vm957, %v956, 0
    %1410 = vmatprep.subr.mxu0 0.0
    %v1411 = vand.u32 %v30, 4294901760
    %1412 = vmatpush1.msra.mxu0 %v1411
    %1413 = vmatprep.subr.mxu0 0.0
    %1414 = vmatpush1.msra.mxu0 0.0
    %1415 = vmatprep.subr.mxu0 0.0
    %1416 = vmatpush1.msra.mxu0 0.0
    %1417 = vmatprep.subr.mxu0 0.0
    %1418 = vmatpush1.msra.mxu0 0.0
    %1419 = vmatprep.subr.mxu0 0.0
    %1420 = vmatpush1.msra.mxu0 0.0
    %1421 = vmatprep.subr.mxu0 0.0
    %1422 = vmatpush1.msra.mxu0 0.0
    %1423 = vmatprep.subr.mxu0 0.0
    %1424 = vmatpush1.msra.mxu0 0.0
    %1425 = vmatprep.subr.mxu0 0.0
    %1426 = vmatpush1.msra.mxu0 0.0
    %1427 = vmatprep.subr.mxu0 0.0
    %1428 = vmatpush1.msra.mxu0 0.0
    %1429 = vmatprep.subr.mxu0 0.0
    %1430 = vmatpush1.msra.mxu0 0.0
    %1431 = vmatprep.subr.mxu0 0.0
    %1432 = vmatpush1.msra.mxu0 0.0
    %1433 = vmatprep.subr.mxu0 0.0
    %1434 = vmatpush1.msra.mxu0 0.0
    %1435 = vmatprep.subr.mxu0 0.0
    %1436 = vmatpush1.msra.mxu0 0.0
    %1437 = vmatprep.subr.mxu0 0.0
    %1438 = vmatpush1.msra.mxu0 0.0
    %1439 = vmatprep.subr.mxu0 0.0
    %1440 = vmatpush1.msra.mxu0 0.0
    %1441 = vmatprep.subr.mxu0 0.0
    %1442 = vmatpush1.msra.mxu0 0.0
    %1443 = vmatprep.subr.mxu0 0.0
    %1444 = vmatpush1.msra.mxu0 0.0
    %1445 = vmatprep.subr.mxu0 0.0
    %1446 = vmatpush1.msra.mxu0 0.0
    %1447 = vmatprep.subr.mxu0 0.0
    %1448 = vmatpush1.msra.mxu0 0.0
    %1449 = vmatprep.subr.mxu0 0.0
    %1450 = vmatpush1.msra.mxu0 0.0
    %1451 = vmatprep.subr.mxu0 0.0
    %1452 = vmatpush1.msra.mxu0 0.0
    %1453 = vmatprep.subr.mxu0 0.0
    %1454 = vmatpush1.msra.mxu0 0.0
    %1455 = vmatprep.subr.mxu0 0.0
    %1456 = vmatpush1.msra.mxu0 0.0
    %1457 = vmatprep.subr.mxu0 0.0
    %1458 = vmatpush1.msra.mxu0 0.0
    %1459 = vmatprep.subr.mxu0 0.0
    %1460 = vmatpush1.msra.mxu0 0.0
    %1461 = vmatprep.subr.mxu0 0.0
    %1462 = vmatpush1.msra.mxu0 0.0
    %1463 = vmatprep.subr.mxu0 0.0
    %1464 = vmatpush1.msra.mxu0 0.0
    %1465 = vmatprep.subr.mxu0 0.0
    %1466 = vmatpush1.msra.mxu0 0.0
    %1467 = vmatprep.subr.mxu0 0.0
    %1468 = vmatpush1.msra.mxu0 0.0
    %1469 = vmatprep.subr.mxu0 0.0
    %1470 = vmatpush1.msra.mxu0 0.0
    %1471 = vmatprep.subr.mxu0 0.0
    %1472 = vmatpush1.msra.mxu0 0.0
    %1473 = vmatprep.subr.mxu0 0.0
    %1474 = vmatpush1.msra.mxu0 0.0
    %1475 = vmatprep.mubr.f32.mxu0 0.0
    %v1476 = vand.u32 %v1408, 4294901760
    %v1477 = vsub.f32 %v1408, %v1476
    %v1478 = vand.u32 %v1477, 4294901760
    %v1479 = vsub.f32 %v1477, %v1478
    %v1480 = vand.u32 %v1479, 4294901760
    %1481 = vmatmul.mubr.f32.gmra.mrb[0].mxu0 %v1480
    %v1482 = vpop.f32.mrb[0].mxu0
    %v1483 = vadd.f32 0.0, %v1482
    %v1484 = vpop.f32.mrb[0].mxu0
    %1485 = vdwg.mxu0
    %1486 = vmatprep.subr.mxu0 0.0
    %v1487 = vand.u32 %v30, 4294901760
    %v1488 = vsub.f32 %v30, %v1487
    %v1489 = vand.u32 %v1488, 4294901760
    %v1490 = vsub.f32 %v1488, %v1489
    %v1491 = vand.u32 %v1490, 4294901760
    %1492 = vmatpush1.msra.mxu0 %v1491
    %1493 = vmatprep.subr.mxu0 0.0
    %1494 = vmatpush1.msra.mxu0 0.0
    %1495 = vmatprep.subr.mxu0 0.0
    %1496 = vmatpush1.msra.mxu0 0.0
    %1497 = vmatprep.subr.mxu0 0.0
    %1498 = vmatpush1.msra.mxu0 0.0
    %1499 = vmatprep.subr.mxu0 0.0
    %1500 = vmatpush1.msra.mxu0 0.0
    %1501 = vmatprep.subr.mxu0 0.0
    %1502 = vmatpush1.msra.mxu0 0.0
    %1503 = vmatprep.subr.mxu0 0.0
    %1504 = vmatpush1.msra.mxu0 0.0
    %1505 = vmatprep.subr.mxu0 0.0
    %1506 = vmatpush1.msra.mxu0 0.0
    %1507 = vmatprep.subr.mxu0 0.0
    %1508 = vmatpush1.msra.mxu0 0.0
    %1509 = vmatprep.subr.mxu0 0.0
    %1510 = vmatpush1.msra.mxu0 0.0
    %1511 = vmatprep.subr.mxu0 0.0
    %1512 = vmatpush1.msra.mxu0 0.0
    %1513 = vmatprep.subr.mxu0 0.0
    %1514 = vmatpush1.msra.mxu0 0.0
    %1515 = vmatprep.subr.mxu0 0.0
    %1516 = vmatpush1.msra.mxu0 0.0
    %1517 = vmatprep.subr.mxu0 0.0
    %1518 = vmatpush1.msra.mxu0 0.0
    %1519 = vmatprep.subr.mxu0 0.0
    %1520 = vmatpush1.msra.mxu0 0.0
    %1521 = vmatprep.subr.mxu0 0.0
    %1522 = vmatpush1.msra.mxu0 0.0
    %1523 = vmatprep.subr.mxu0 0.0
    %1524 = vmatpush1.msra.mxu0 0.0
    %1525 = vmatprep.subr.mxu0 0.0
    %1526 = vmatpush1.msra.mxu0 0.0
    %1527 = vmatprep.subr.mxu0 0.0
    %1528 = vmatpush1.msra.mxu0 0.0
    %1529 = vmatprep.subr.mxu0 0.0
    %1530 = vmatpush1.msra.mxu0 0.0
    %1531 = vmatprep.subr.mxu0 0.0
    %1532 = vmatpush1.msra.mxu0 0.0
    %1533 = vmatprep.subr.mxu0 0.0
    %1534 = vmatpush1.msra.mxu0 0.0
    %1535 = vmatprep.subr.mxu0 0.0
    %1536 = vmatpush1.msra.mxu0 0.0
    %1537 = vmatprep.subr.mxu0 0.0
    %1538 = vmatpush1.msra.mxu0 0.0
    %1539 = vmatprep.subr.mxu0 0.0
    %1540 = vmatpush1.msra.mxu0 0.0
    %1541 = vmatprep.subr.mxu0 0.0
    %1542 = vmatpush1.msra.mxu0 0.0
    %1543 = vmatprep.subr.mxu0 0.0
    %1544 = vmatpush1.msra.mxu0 0.0
    %1545 = vmatprep.subr.mxu0 0.0
    %1546 = vmatpush1.msra.mxu0 0.0
    %1547 = vmatprep.subr.mxu0 0.0
    %1548 = vmatpush1.msra.mxu0 0.0
    %1549 = vmatprep.subr.mxu0 0.0
    %1550 = vmatpush1.msra.mxu0 0.0
    %1551 = vmatprep.subr.mxu0 0.0
    %1552 = vmatpush1.msra.mxu0 0.0
    %1553 = vmatprep.subr.mxu0 0.0
    %1554 = vmatpush1.msra.mxu0 0.0
    %1555 = vmatprep.mubr.f32.mxu0 0.0
    %v1556 = vand.u32 %v1408, 4294901760
    %1557 = vmatmul.mubr.f32.gmra.mrb[0].mxu0 %v1556
    %v1558 = vpop.f32.mrb[0].mxu0
    %v1559 = vadd.f32 %v1483, %v1558
    %v1560 = vpop.f32.mrb[0].mxu0
    %1561 = vdwg.mxu0
    %1562 = vmatprep.subr.mxu0 0.0
    %v1563 = vand.u32 %v30, 4294901760
    %v1564 = vsub.f32 %v30, %v1563
    %1565 = vmatpush1.msra.mxu0 %v1564
    %1566 = vmatprep.subr.mxu0 0.0
    %1567 = vmatpush1.msra.mxu0 0.0
    %1568 = vmatprep.subr.mxu0 0.0
    %1569 = vmatpush1.msra.mxu0 0.0
    %1570 = vmatprep.subr.mxu0 0.0
    %1571 = vmatpush1.msra.mxu0 0.0
    %1572 = vmatprep.subr.mxu0 0.0
    %1573 = vmatpush1.msra.mxu0 0.0
    %1574 = vmatprep.subr.mxu0 0.0
    %1575 = vmatpush1.msra.mxu0 0.0
    %1576 = vmatprep.subr.mxu0 0.0
    %1577 = vmatpush1.msra.mxu0 0.0
    %1578 = vmatprep.subr.mxu0 0.0
    %1579 = vmatpush1.msra.mxu0 0.0
    %1580 = vmatprep.subr.mxu0 0.0
    %1581 = vmatpush1.msra.mxu0 0.0
    %1582 = vmatprep.subr.mxu0 0.0
    %1583 = vmatpush1.msra.mxu0 0.0
    %1584 = vmatprep.subr.mxu0 0.0
    %1585 = vmatpush1.msra.mxu0 0.0
    %1586 = vmatprep.subr.mxu0 0.0
    %1587 = vmatpush1.msra.mxu0 0.0
    %1588 = vmatprep.subr.mxu0 0.0
    %1589 = vmatpush1.msra.mxu0 0.0
    %1590 = vmatprep.subr.mxu0 0.0
    %1591 = vmatpush1.msra.mxu0 0.0
    %1592 = vmatprep.subr.mxu0 0.0
    %1593 = vmatpush1.msra.mxu0 0.0
    %1594 = vmatprep.subr.mxu0 0.0
    %1595 = vmatpush1.msra.mxu0 0.0
    %1596 = vmatprep.subr.mxu0 0.0
    %1597 = vmatpush1.msra.mxu0 0.0
    %1598 = vmatprep.subr.mxu0 0.0
    %1599 = vmatpush1.msra.mxu0 0.0
    %1600 = vmatprep.subr.mxu0 0.0
    %1601 = vmatpush1.msra.mxu0 0.0
    %1602 = vmatprep.subr.mxu0 0.0
    %1603 = vmatpush1.msra.mxu0 0.0
    %1604 = vmatprep.subr.mxu0 0.0
    %1605 = vmatpush1.msra.mxu0 0.0
    %1606 = vmatprep.subr.mxu0 0.0
    %1607 = vmatpush1.msra.mxu0 0.0
    %1608 = vmatprep.subr.mxu0 0.0
    %1609 = vmatpush1.msra.mxu0 0.0
    %1610 = vmatprep.subr.mxu0 0.0
    %1611 = vmatpush1.msra.mxu0 0.0
    %1612 = vmatprep.subr.mxu0 0.0
    %1613 = vmatpush1.msra.mxu0 0.0
    %1614 = vmatprep.subr.mxu0 0.0
    %1615 = vmatpush1.msra.mxu0 0.0
    %1616 = vmatprep.subr.mxu0 0.0
    %1617 = vmatpush1.msra.mxu0 0.0
    %1618 = vmatprep.subr.mxu0 0.0
    %1619 = vmatpush1.msra.mxu0 0.0
    %1620 = vmatprep.subr.mxu0 0.0
    %1621 = vmatpush1.msra.mxu0 0.0
    %1622 = vmatprep.subr.mxu0 0.0
    %1623 = vmatpush1.msra.mxu0 0.0
    %1624 = vmatprep.subr.mxu0 0.0
    %1625 = vmatpush1.msra.mxu0 0.0
    %1626 = vmatprep.subr.mxu0 0.0
    %1627 = vmatpush1.msra.mxu0 0.0
    %1628 = vmatprep.mubr.f32.mxu0 0.0
    %v1629 = vand.u32 %v1408, 4294901760
    %v1630 = vsub.f32 %v1408, %v1629
    %1631 = vmatmul.mubr.f32.gmra.mrb[0].mxu0 %v1630
    %v1632 = vpop.f32.mrb[0].mxu0
    %v1633 = vadd.f32 %v1559, %v1632
    %v1634 = vpop.f32.mrb[0].mxu0
    %1635 = vdwg.mxu0
    %1636 = vmatprep.subr.mxu0 0.0
    %v1637 = vand.u32 %v30, 4294901760
    %1638 = vmatpush1.msra.mxu0 %v1637
    %1639 = vmatprep.subr.mxu0 0.0
    %1640 = vmatpush1.msra.mxu0 0.0
    %1641 = vmatprep.subr.mxu0 0.0
    %1642 = vmatpush1.msra.mxu0 0.0
    %1643 = vmatprep.subr.mxu0 0.0
    %1644 = vmatpush1.msra.mxu0 0.0
    %1645 = vmatprep.subr.mxu0 0.0
    %1646 = vmatpush1.msra.mxu0 0.0
    %1647 = vmatprep.subr.mxu0 0.0
    %1648 = vmatpush1.msra.mxu0 0.0
    %1649 = vmatprep.subr.mxu0 0.0
    %1650 = vmatpush1.msra.mxu0 0.0
    %1651 = vmatprep.subr.mxu0 0.0
    %1652 = vmatpush1.msra.mxu0 0.0
    %1653 = vmatprep.subr.mxu0 0.0
    %1654 = vmatpush1.msra.mxu0 0.0
    %1655 = vmatprep.subr.mxu0 0.0
    %1656 = vmatpush1.msra.mxu0 0.0
    %1657 = vmatprep.subr.mxu0 0.0
    %1658 = vmatpush1.msra.mxu0 0.0
    %1659 = vmatprep.subr.mxu0 0.0
    %1660 = vmatpush1.msra.mxu0 0.0
    %1661 = vmatprep.subr.mxu0 0.0
    %1662 = vmatpush1.msra.mxu0 0.0
    %1663 = vmatprep.subr.mxu0 0.0
    %1664 = vmatpush1.msra.mxu0 0.0
    %1665 = vmatprep.subr.mxu0 0.0
    %1666 = vmatpush1.msra.mxu0 0.0
    %1667 = vmatprep.subr.mxu0 0.0
    %1668 = vmatpush1.msra.mxu0 0.0
    %1669 = vmatprep.subr.mxu0 0.0
    %1670 = vmatpush1.msra.mxu0 0.0
    %1671 = vmatprep.subr.mxu0 0.0
    %1672 = vmatpush1.msra.mxu0 0.0
    %1673 = vmatprep.subr.mxu0 0.0
    %1674 = vmatpush1.msra.mxu0 0.0
    %1675 = vmatprep.subr.mxu0 0.0
    %1676 = vmatpush1.msra.mxu0 0.0
    %1677 = vmatprep.subr.mxu0 0.0
    %1678 = vmatpush1.msra.mxu0 0.0
    %1679 = vmatprep.subr.mxu0 0.0
    %1680 = vmatpush1.msra.mxu0 0.0
    %1681 = vmatprep.subr.mxu0 0.0
    %1682 = vmatpush1.msra.mxu0 0.0
    %1683 = vmatprep.subr.mxu0 0.0
    %1684 = vmatpush1.msra.mxu0 0.0
    %1685 = vmatprep.subr.mxu0 0.0
    %1686 = vmatpush1.msra.mxu0 0.0
    %1687 = vmatprep.subr.mxu0 0.0
    %1688 = vmatpush1.msra.mxu0 0.0
    %1689 = vmatprep.subr.mxu0 0.0
    %1690 = vmatpush1.msra.mxu0 0.0
    %1691 = vmatprep.subr.mxu0 0.0
    %1692 = vmatpush1.msra.mxu0 0.0
    %1693 = vmatprep.subr.mxu0 0.0
    %1694 = vmatpush1.msra.mxu0 0.0
    %1695 = vmatprep.subr.mxu0 0.0
    %1696 = vmatpush1.msra.mxu0 0.0
    %1697 = vmatprep.subr.mxu0 0.0
    %1698 = vmatpush1.msra.mxu0 0.0
    %1699 = vmatprep.subr.mxu0 0.0
    %1700 = vmatpush1.msra.mxu0 0.0
    %1701 = vmatprep.mubr.f32.mxu0 0.0
    %v1702 = vand.u32 %v1408, 4294901760
    %v1703 = vsub.f32 %v1408, %v1702
    %v1704 = vand.u32 %v1703, 4294901760
    %1705 = vmatmul.mubr.f32.gmra.mrb[0].mxu0 %v1704
    %v1706 = vpop.f32.mrb[0].mxu0
    %v1707 = vadd.f32 %v1633, %v1706
    %v1708 = vpop.f32.mrb[0].mxu0
    %1709 = vdwg.mxu0
    %1710 = vmatprep.subr.mxu0 0.0
    %v1711 = vand.u32 %v30, 4294901760
    %v1712 = vsub.f32 %v30, %v1711
    %v1713 = vand.u32 %v1712, 4294901760
    %1714 = vmatpush1.msra.mxu0 %v1713
    %1715 = vmatprep.subr.mxu0 0.0
    %1716 = vmatpush1.msra.mxu0 0.0
    %1717 = vmatprep.subr.mxu0 0.0
    %1718 = vmatpush1.msra.mxu0 0.0
    %1719 = vmatprep.subr.mxu0 0.0
    %1720 = vmatpush1.msra.mxu0 0.0
    %1721 = vmatprep.subr.mxu0 0.0
    %1722 = vmatpush1.msra.mxu0 0.0
    %1723 = vmatprep.subr.mxu0 0.0
    %1724 = vmatpush1.msra.mxu0 0.0
    %1725 = vmatprep.subr.mxu0 0.0
    %1726 = vmatpush1.msra.mxu0 0.0
    %1727 = vmatprep.subr.mxu0 0.0
    %1728 = vmatpush1.msra.mxu0 0.0
    %1729 = vmatprep.subr.mxu0 0.0
    %1730 = vmatpush1.msra.mxu0 0.0
    %1731 = vmatprep.subr.mxu0 0.0
    %1732 = vmatpush1.msra.mxu0 0.0
    %1733 = vmatprep.subr.mxu0 0.0
    %1734 = vmatpush1.msra.mxu0 0.0
    %1735 = vmatprep.subr.mxu0 0.0
    %1736 = vmatpush1.msra.mxu0 0.0
    %1737 = vmatprep.subr.mxu0 0.0
    %1738 = vmatpush1.msra.mxu0 0.0
    %1739 = vmatprep.subr.mxu0 0.0
    %1740 = vmatpush1.msra.mxu0 0.0
    %1741 = vmatprep.subr.mxu0 0.0
    %1742 = vmatpush1.msra.mxu0 0.0
    %1743 = vmatprep.subr.mxu0 0.0
    %1744 = vmatpush1.msra.mxu0 0.0
    %1745 = vmatprep.subr.mxu0 0.0
    %1746 = vmatpush1.msra.mxu0 0.0
    %1747 = vmatprep.subr.mxu0 0.0
    %1748 = vmatpush1.msra.mxu0 0.0
    %1749 = vmatprep.subr.mxu0 0.0
    %1750 = vmatpush1.msra.mxu0 0.0
    %1751 = vmatprep.subr.mxu0 0.0
    %1752 = vmatpush1.msra.mxu0 0.0
    %1753 = vmatprep.subr.mxu0 0.0
    %1754 = vmatpush1.msra.mxu0 0.0
    %1755 = vmatprep.subr.mxu0 0.0
    %1756 = vmatpush1.msra.mxu0 0.0
    %1757 = vmatprep.subr.mxu0 0.0
    %1758 = vmatpush1.msra.mxu0 0.0
    %1759 = vmatprep.subr.mxu0 0.0
    %1760 = vmatpush1.msra.mxu0 0.0
    %1761 = vmatprep.subr.mxu0 0.0
    %1762 = vmatpush1.msra.mxu0 0.0
    %1763 = vmatprep.subr.mxu0 0.0
    %1764 = vmatpush1.msra.mxu0 0.0
    %1765 = vmatprep.subr.mxu0 0.0
    %1766 = vmatpush1.msra.mxu0 0.0
    %1767 = vmatprep.subr.mxu0 0.0
    %1768 = vmatpush1.msra.mxu0 0.0
    %1769 = vmatprep.subr.mxu0 0.0
    %1770 = vmatpush1.msra.mxu0 0.0
    %1771 = vmatprep.subr.mxu0 0.0
    %1772 = vmatpush1.msra.mxu0 0.0
    %1773 = vmatprep.subr.mxu0 0.0
    %1774 = vmatpush1.msra.mxu0 0.0
    %1775 = vmatprep.subr.mxu0 0.0
    %1776 = vmatpush1.msra.mxu0 0.0
    %1777 = vmatprep.mubr.f32.mxu0 0.0
    %v1778 = vand.u32 %v1408, 4294901760
    %1779 = vmatmul.mubr.f32.gmra.mrb[0].mxu0 %v1778
    %v1780 = vpop.f32.mrb[0].mxu0
    %v1781 = vadd.f32 %v1707, %v1780
    %v1782 = vpop.f32.mrb[0].mxu0
    %1783 = vdwg.mxu0
    %1784 = vmatprep.subr.mxu0 0.0
    %v1785 = vand.u32 %v30, 4294901760
    %1786 = vmatpush1.msra.mxu0 %v1785
    %1787 = vmatprep.subr.mxu0 0.0
    %1788 = vmatpush1.msra.mxu0 0.0
    %1789 = vmatprep.subr.mxu0 0.0
    %1790 = vmatpush1.msra.mxu0 0.0
    %1791 = vmatprep.subr.mxu0 0.0
    %1792 = vmatpush1.msra.mxu0 0.0
    %1793 = vmatprep.subr.mxu0 0.0
    %1794 = vmatpush1.msra.mxu0 0.0
    %1795 = vmatprep.subr.mxu0 0.0
    %1796 = vmatpush1.msra.mxu0 0.0
    %1797 = vmatprep.subr.mxu0 0.0
    %1798 = vmatpush1.msra.mxu0 0.0
    %1799 = vmatprep.subr.mxu0 0.0
    %1800 = vmatpush1.msra.mxu0 0.0
    %1801 = vmatprep.subr.mxu0 0.0
    %1802 = vmatpush1.msra.mxu0 0.0
    %1803 = vmatprep.subr.mxu0 0.0
    %1804 = vmatpush1.msra.mxu0 0.0
    %1805 = vmatprep.subr.mxu0 0.0
    %1806 = vmatpush1.msra.mxu0 0.0
    %1807 = vmatprep.subr.mxu0 0.0
    %1808 = vmatpush1.msra.mxu0 0.0
    %1809 = vmatprep.subr.mxu0 0.0
    %1810 = vmatpush1.msra.mxu0 0.0
    %1811 = vmatprep.subr.mxu0 0.0
    %1812 = vmatpush1.msra.mxu0 0.0
    %1813 = vmatprep.subr.mxu0 0.0
    %1814 = vmatpush1.msra.mxu0 0.0
    %1815 = vmatprep.subr.mxu0 0.0
    %1816 = vmatpush1.msra.mxu0 0.0
    %1817 = vmatprep.subr.mxu0 0.0
    %1818 = vmatpush1.msra.mxu0 0.0
    %1819 = vmatprep.subr.mxu0 0.0
    %1820 = vmatpush1.msra.mxu0 0.0
    %1821 = vmatprep.subr.mxu0 0.0
    %1822 = vmatpush1.msra.mxu0 0.0
    %1823 = vmatprep.subr.mxu0 0.0
    %1824 = vmatpush1.msra.mxu0 0.0
    %1825 = vmatprep.subr.mxu0 0.0
    %1826 = vmatpush1.msra.mxu0 0.0
    %1827 = vmatprep.subr.mxu0 0.0
    %1828 = vmatpush1.msra.mxu0 0.0
    %1829 = vmatprep.subr.mxu0 0.0
    %1830 = vmatpush1.msra.mxu0 0.0
    %1831 = vmatprep.subr.mxu0 0.0
    %1832 = vmatpush1.msra.mxu0 0.0
    %1833 = vmatprep.subr.mxu0 0.0
    %1834 = vmatpush1.msra.mxu0 0.0
    %1835 = vmatprep.subr.mxu0 0.0
    %1836 = vmatpush1.msra.mxu0 0.0
    %1837 = vmatprep.subr.mxu0 0.0
    %1838 = vmatpush1.msra.mxu0 0.0
    %1839 = vmatprep.subr.mxu0 0.0
    %1840 = vmatpush1.msra.mxu0 0.0
    %1841 = vmatprep.subr.mxu0 0.0
    %1842 = vmatpush1.msra.mxu0 0.0
    %1843 = vmatprep.subr.mxu0 0.0
    %1844 = vmatpush1.msra.mxu0 0.0
    %1845 = vmatprep.subr.mxu0 0.0
    %1846 = vmatpush1.msra.mxu0 0.0
    %1847 = vmatprep.subr.mxu0 0.0
    %1848 = vmatpush1.msra.mxu0 0.0
    %1849 = vmatprep.mubr.f32.mxu0 0.0
    %v1850 = vand.u32 %v1408, 4294901760
    %1851 = vmatmul.mubr.f32.gmra.mrb[0].mxu0 %v1850
    %v1852 = vpop.f32.mrb[0].mxu0
    %v1853 = vadd.f32 %v1781, %v1852
    %v1854 = vpop.f32.mrb[0].mxu0
    %1855 = vdwg.mxu0
    %vm1856 = vcmask 253952
    %1857 = vst.msk [vmem:[#allocation5] sm:$0x1] %vm1856, %v1404
    %1858 = vst.msk [vmem:[#allocation5 + $0x1] sm:$0x1] %vm1856, %v1853
    %1859 = vst.msk [vmem:[#allocation6] sm:$0x1] %vm934, %v954
    %1860 = vst.msk [vmem:[#allocation6 + $0x1] sm:$0x1] %vm934, %v956
    // Predicated region
    $region14: #{tpu_custom_call.1} parent=1 // pred_check
      _
    $region15: #{tpu_custom_call.1} parent=1 // pred_check_branch
      %1862 = sbr.rel (0) target = $region17
    $region16: #{tpu_custom_call.1} parent=1 // pred_region
      %s1864 = ssub.s32 32, 32
      %1865 = vsyncadd [#allocation4], %s1864
      %s1866 = sshll.u32 [#allocation5], 4
      %s1867 = int_to_ptr.vmem [resolvable:$true] %s1866
      %1872 = dma.vmem_to_hbm [thread:$0]  %s1867, 32, %s2, [#allocation4], 16, 16, 1
    $region17: #{tpu_custom_call.1} parent=1 // pred_fallthru
      _
    // Predicated region
    $region18: #{tpu_custom_call.1} parent=1 // pred_check
      _
    $region19: #{tpu_custom_call.1} parent=1 // pred_check_branch
      %1874 = sbr.rel (0) target = $region21
    $region20: #{tpu_custom_call.1} parent=1 // pred_region
      %s1876 = ssub.s32 32, 32
      %1877 = vsyncadd [#allocation7], %s1876
      %s1878 = sshll.u32 [#allocation6], 4
      %s1879 = int_to_ptr.vmem [resolvable:$true] %s1878
      %1884 = dma.vmem_to_hbm [thread:$0]  %s1879, 32, %s3, [#allocation7], 16, 16, 1
    $region21: #{tpu_custom_call.1} parent=1 // pred_fallthru
      _
    // Predicated region
    $region22: #{tpu_custom_call.1} parent=1 // pred_check
      _
    $region23: #{tpu_custom_call.1} parent=1 // pred_check_branch
      %1886 = sbr.rel (0) target = $region25
    $region24: #{tpu_custom_call.1} parent=1 // pred_region
      %1887 = dma.done [#allocation4], 32
    $region25: #{tpu_custom_call.1} parent=1 // pred_fallthru
      _
    // Predicated region
    $region26: #{tpu_custom_call.1} parent=1 // pred_check
      _
    $region27: #{tpu_custom_call.1} parent=1 // pred_check_branch
      %1889 = sbr.rel (0) target = $region29
    $region28: #{tpu_custom_call.1} parent=1 // pred_region
      %1890 = dma.done [#allocation7], 32
    $region29: #{tpu_custom_call.1} parent=1 // pred_fallthru
      _
    %1891 = vsyncpa [#allocation3], 1
    %1892 = vsyncpa [#allocation4], 1
    %1893 = vsyncpa [#allocation7], 1

</llo_original>
